<compile_context>
chip_gen: v7x
topology: tpu7x:2x2x1
jax: 0.10.0
libtpu: 0.0.40
codegen_flags: <defaults>
</compile_context>

<pallas_src>
import functools

import jax
import jax.numpy as jnp
from jax.experimental import pallas as pl
from jax.experimental.pallas import tpu as pltpu


# ------------------------------- helpers --------------------------------------

def _round_up(x, m):
    return (x + m - 1) // m * m


def _choose_row_tile(m, tm_default=1024, mult=16):
    """Row tile: as large as possible for HBM-roofline efficiency, but split
    into >= 2 grid steps (when rows allow) so the 'parallel' axis can shard
    across both v7x TensorCores."""
    tm = min(tm_default, _round_up(m, mult))
    if _round_up(m, tm) // tm < 2 and m > mult:
        tm = _round_up((m + 1) // 2, mult)
    mp = _round_up(m, tm)
    return tm, mp


# ------------------------------- Pallas kernel ---------------------------------

def fused_encoder_kernel(p_ref, wc_ref, bc_ref, wpk_ref, t0_ref, w1_ref,
                         bout_ref, o_ref, *, ep):
    """One row tile of: backbone conv (im2col matmul)+ReLU -> EncoderImageAggr.

        x     = relu(patches @ w_conv + b_conv)           # backbone, stays in VMEM
        f | h = x @ [wfc | w0*s0]                         # packed matmul, N=Ep+Hp
        h     = relu(h + t0')
        out   = f + h @ (w1*s1) + (bfc + t1')             # fc + MLP (BN folded)
    """
    x = jnp.dot(p_ref[...], wc_ref[...], preferred_element_type=jnp.float32)
    x = jnp.maximum(x + bc_ref[...], 0.0).astype(jnp.bfloat16)

    fh = jnp.dot(x, wpk_ref[...], preferred_element_type=jnp.float32)
    fc = fh[:, :ep]                                        # 128-lane aligned split
    h = jnp.maximum(fh[:, ep:] + t0_ref[...], 0.0).astype(jnp.bfloat16)
    y = jnp.dot(h, w1_ref[...], preferred_element_type=jnp.float32)

    o_ref[...] = (fc + y + bout_ref[...]).astype(o_ref.dtype)


# ------------------------------- JAX glue --------------------------------------

def im2col(x, k=3, stride=2, pad=1):
    """x: [B, C, H, W] -> patches [B*OH*OW, C*k*k] (kk fastest within C)."""
    B, C, H, W = x.shape
    xp = jnp.pad(x, ((0, 0), (0, 0), (pad, pad), (pad, pad)))
    OH = (H + 2 * pad - k) // stride + 1
    OW = (W + 2 * pad - k) // stride + 1
    cols = []
    for i in range(k):
        for j in range(k):
            cols.append(xp[:, :, i:i + stride * OH:stride, j:j + stride * OW:stride])
    patches = jnp.stack(cols, axis=1)                 # [B, kk, C, OH, OW]
    patches = patches.transpose(0, 3, 4, 2, 1)        # [B, OH, OW, C, kk]
    return patches.reshape(B * OH * OW, C * k * k), OH, OW


def encoder_image_full_forward(images, params, *, embed_size,
                               tm_default=1024, single_buffer_weights=True):
    """Backbone conv+ReLU followed by EncoderImageAggr, fused into one
    row-tiled Pallas kernel.  Returns [B, OH*OW, embed_size] float32."""
    B = images.shape[0]
    patches, OH, OW = im2col(images.astype(jnp.bfloat16), k=3, stride=2, pad=1)
    M, Kc = patches.shape

    Kp, Dp = params["w_conv"].shape          # padded contraction / feature dims
    EHp = params["w_pack"].shape[1]          # Ep + Hp (packed lanes)
    Hp = params["t0"].shape[1]
    Ep = EHp - Hp

    tm, Mp = _choose_row_tile(M, tm_default)
    patches = jnp.pad(patches, ((0, Mp - M), (0, Kp - Kc)))

    def resident(shape):
        # Constant-index operands are VMEM-resident for the whole pipeline;
        # a second pipeline buffer for them is pure VMEM waste (matters on
        # the 64 MiB v7x part), so request single buffering when supported.
        index_map = lambda i: (0,) * len(shape)
        if single_buffer_weights:
            try:
                return pl.BlockSpec(shape, index_map,
                                    pipeline_mode=pl.Buffered(buffer_count=1))
            except Exception:
                pass
        return pl.BlockSpec(shape, index_map)

    flops = 2 * Mp * (Kp * Dp + Dp * EHp + Hp * Ep)
    bytes_accessed = (Mp * Kp * 2 + Mp * Ep * 4                    # patches in, out
                      + (Kp * Dp + Dp * EHp + Hp * Ep) * 2         # bf16 weights
                      + (Dp + Hp + Ep) * 4)                        # f32 biases

    out = pl.pallas_call(
        functools.partial(fused_encoder_kernel, ep=Ep),
        grid=(Mp // tm,),
        in_specs=[
            pl.BlockSpec((tm, Kp), lambda i: (i, 0)),   # patch row tile (streams)
            resident((Kp, Dp)),                         # w_conv
            resident((1, Dp)),                          # b_conv
            resident((Dp, EHp)),                        # [wfc | w0*s0] packed
            resident((1, Hp)),                          # t0'
            resident((Hp, Ep)),                         # w1*s1
            resident((1, Ep)),                          # bfc + t1'
        ],
        out_specs=pl.BlockSpec((tm, Ep), lambda i: (i, 0)),
        out_shape=jax.ShapeDtypeStruct((Mp, Ep), jnp.float32),
        compiler_params=pltpu.CompilerParams(
            dimension_semantics=("parallel",),
            vmem_limit_bytes=48 * 1024 * 1024,
        ),
        cost_estimate=pl.CostEstimate(flops=flops, transcendentals=0,
                                      bytes_accessed=bytes_accessed),
    )(patches, params["w_conv"], params["b_conv"], params["w_pack"],
      params["t0"], params["w1"], params["b_out"])

    # Single slice at the very end (static Python ints -> no tracer slicing).
    return out[:M, :embed_size].reshape(B, OH * OW, embed_size)


# ----------------------------- parameter init ----------------------------------

def init_params(key, c_in=4, img_dim=32, embed_size=64, k=3):
    """Build params: BN (eval mode) folded into Linear weights, fc + MLP-0
    weights packed horizontally, all feature dims zero-padded to multiples of
    128, matmul weights cast to bf16.  No Python scalars inside the dict."""
    hid = embed_size // 2
    keys = jax.random.split(key, 12)
    eps = 1e-5

    Kc = c_in * k * k
    Kp = _round_up(Kc, 128)
    Dp = _round_up(img_dim, 128)
    Hp = _round_up(hid, 128)
    Ep = _round_up(embed_size, 128)

    # Backbone conv: weight pre-flattened as [C_in*k*k, img_dim]
    # (kk fastest within C, matching im2col patch ordering).
    w_conv = jax.random.uniform(keys[0], (Kc, img_dim),
                                minval=-0.1, maxval=0.1, dtype=jnp.float32)
    b_conv = jax.random.uniform(keys[1], (1, img_dim),
                                minval=-0.1, maxval=0.1, dtype=jnp.float32)

    # fc: Xavier uniform (EncoderImageAggr.init_weights), bias = 0.
    r = jnp.sqrt(6.0) / jnp.sqrt(float(img_dim + embed_size))
    wfc = jax.random.uniform(keys[2], (img_dim, embed_size),
                             minval=-r, maxval=r, dtype=jnp.float32)
    bfc = jnp.zeros((1, embed_size), dtype=jnp.float32)

    # MLP layer 0: Linear(img_dim, hid) + BatchNorm1d(hid) (eval) folded in.
    r0 = 1.0 / jnp.sqrt(float(img_dim))
    w0 = jax.random.uniform(keys[3], (img_dim, hid), minval=-r0, maxval=r0,
                            dtype=jnp.float32)
    b0 = jax.random.uniform(keys[4], (1, hid), minval=-r0, maxval=r0,
                            dtype=jnp.float32)
    g0 = 1.0 + 0.1 * jax.random.normal(keys[5], (1, hid), dtype=jnp.float32)
    beta0 = 0.1 * jax.random.normal(keys[6], (1, hid), dtype=jnp.float32)
    rm0 = 0.1 * jax.random.normal(keys[7], (1, hid), dtype=jnp.float32)
    rv0 = 1.0 + 0.1 * jax.random.uniform(keys[8], (1, hid), dtype=jnp.float32)
    s0 = g0 / jnp.sqrt(rv0 + eps)
    w0_f = w0 * s0                       # fold BN scale into columns
    t0_f = b0 * s0 + (beta0 - rm0 * s0)  # fold Linear bias + BN shift

    # MLP layer 1: Linear(hid, embed_size) + BatchNorm1d(embed_size) (eval) folded.
    r1 = 1.0 / jnp.sqrt(float(hid))
    w1 = jax.random.uniform(keys[9], (hid, embed_size), minval=-r1, maxval=r1,
                            dtype=jnp.float32)
    b1 = jax.random.uniform(keys[10], (1, embed_size), minval=-r1, maxval=r1,
                            dtype=jnp.float32)
    g1 = jnp.ones((1, embed_size), dtype=jnp.float32)
    beta1 = jnp.zeros((1, embed_size), dtype=jnp.float32)
    rm1 = 0.05 * jax.random.normal(keys[11], (1, embed_size), dtype=jnp.float32)
    rv1 = jnp.ones((1, embed_size), dtype=jnp.float32)
    s1 = g1 / jnp.sqrt(rv1 + eps)
    w1_f = w1 * s1
    t1_f = b1 * s1 + (beta1 - rm1 * s1)
    b_out = bfc + t1_f                   # fc bias merged with final BN shift

    def pad2(a, rows, cols):
        return jnp.pad(a, ((0, rows - a.shape[0]), (0, cols - a.shape[1])))

    # Horizontally pack [wfc | w0'] so the aggr's first stage is a single
    # N = Ep+Hp (=256) matmul filling the 256-wide MXU; split is 128-aligned.
    w_pack = jnp.concatenate([pad2(wfc, Dp, Ep), pad2(w0_f, Dp, Hp)], axis=1)

    return dict(
        w_conv=pad2(w_conv, Kp, Dp).astype(jnp.bfloat16),
        b_conv=pad2(b_conv, 1, Dp),
        w_pack=w_pack.astype(jnp.bfloat16),
        t0=pad2(t0_f, 1, Hp),
        w1=pad2(w1_f, Hp, Ep).astype(jnp.bfloat16),
        b_out=pad2(b_out, 1, Ep),
    )


# ------------------------------------ main --------------------------------------

if __name__ == "__main__":
    key = jax.random.PRNGKey(0)
    k_img, k_par = jax.random.split(key)

    B, C, H, W = 2, 4, 16, 16
    img_dim, embed_size = 32, 64

    images = jax.random.normal(k_img, (B, C, H, W), dtype=jnp.float32)
    params = init_params(k_par, c_in=C, img_dim=img_dim, embed_size=embed_size)

    def run(single_buffer):
        fwd = jax.jit(functools.partial(
            encoder_image_full_forward,
            embed_size=embed_size,
            single_buffer_weights=single_buffer))
        return jax.block_until_ready(fwd(images, params))

    try:
        features = run(True)       # single-buffered resident weights (v7x VMEM)
    except Exception:
        features = run(False)      # jax build without pipeline_mode support

    assert features.shape == (B, (H // 2) * (W // 2), embed_size), features.shape
    assert features.dtype == jnp.float32
    print("KERNEL_OK")
</pallas_src>

<mosaic_0001>
module attributes {stable_mosaic.version = 11 : i64} {
  func.func @fused_encoder_kernel(%arg0: i32, %arg1: memref<64x128xbf16, #tpu.memory_space<vmem>>, %arg2: memref<128x128xbf16, #tpu.memory_space<vmem>>, %arg3: memref<1x128xf32, #tpu.memory_space<vmem>>, %arg4: memref<128x256xbf16, #tpu.memory_space<vmem>>, %arg5: memref<1x128xf32, #tpu.memory_space<vmem>>, %arg6: memref<128x128xbf16, #tpu.memory_space<vmem>>, %arg7: memref<1x128xf32, #tpu.memory_space<vmem>>, %arg8: memref<64x128xf32, #tpu.memory_space<vmem>>) attributes {dimension_semantics = [#tpu.dimension_semantics<parallel>], iteration_bounds = array<i64: 2>, scalar_prefetch = 0 : i64, scratch_operands = 0 : i64, tpu.core_type = #tpu.core_type<tc>, window_params = [{transform_indices = @transform_0, window_bounds = array<i64: 64, 128>}, {pipeline_mode = #tpu.pipeline_mode<synchronous>, transform_indices = @transform_1, window_bounds = array<i64: 128, 128>}, {pipeline_mode = #tpu.pipeline_mode<synchronous>, transform_indices = @transform_2, window_bounds = array<i64: 1, 128>}, {pipeline_mode = #tpu.pipeline_mode<synchronous>, transform_indices = @transform_3, window_bounds = array<i64: 128, 256>}, {pipeline_mode = #tpu.pipeline_mode<synchronous>, transform_indices = @transform_4, window_bounds = array<i64: 1, 128>}, {pipeline_mode = #tpu.pipeline_mode<synchronous>, transform_indices = @transform_5, window_bounds = array<i64: 128, 128>}, {pipeline_mode = #tpu.pipeline_mode<synchronous>, transform_indices = @transform_6, window_bounds = array<i64: 1, 128>}, {transform_indices = @transform_7, window_bounds = array<i64: 64, 128>}]} {
    %c0 = arith.constant 0 : index
    %c0_0 = arith.constant 0 : index
    %0 = vector.load %arg1[%c0, %c0_0] : memref<64x128xbf16, #tpu.memory_space<vmem>>, vector<64x128xbf16>
    %c0_1 = arith.constant 0 : index
    %c0_2 = arith.constant 0 : index
    %1 = vector.load %arg2[%c0_1, %c0_2] : memref<128x128xbf16, #tpu.memory_space<vmem>>, vector<128x128xbf16>
    %cst = arith.constant dense<0.000000e+00> : vector<64x128xf32>
    %2 = tpu.matmul %0, %1, %cst {dimension_numbers = #tpu.dot_dimension_numbers<[1], [0], [0], [1], [0, 0, 1, 1], [], []>} : vector<64x128xbf16>, vector<128x128xbf16>, vector<64x128xf32> -> vector<64x128xf32>
    %c0_3 = arith.constant 0 : index
    %c0_4 = arith.constant 0 : index
    %3 = vector.load %arg3[%c0_3, %c0_4] : memref<1x128xf32, #tpu.memory_space<vmem>>, vector<1x128xf32>
    %4 = vector.broadcast %3 : vector<1x128xf32> to vector<64x128xf32>
    %5 = arith.addf %2, %4 : vector<64x128xf32>
    %cst_5 = arith.constant 0.000000e+00 : f32
    %6 = vector.broadcast %cst_5 : f32 to vector<64x128xf32>
    %7 = arith.maximumf %5, %6 : vector<64x128xf32>
    %8 = arith.truncf %7 : vector<64x128xf32> to vector<64x128xbf16>
    %c0_6 = arith.constant 0 : index
    %c0_7 = arith.constant 0 : index
    %9 = vector.load %arg4[%c0_6, %c0_7] : memref<128x256xbf16, #tpu.memory_space<vmem>>, vector<128x256xbf16>
    %cst_8 = arith.constant dense<0.000000e+00> : vector<64x256xf32>
    %10 = tpu.matmul %8, %9, %cst_8 {dimension_numbers = #tpu.dot_dimension_numbers<[1], [0], [0], [1], [0, 0, 1, 1], [], []>} : vector<64x128xbf16>, vector<128x256xbf16>, vector<64x256xf32> -> vector<64x256xf32>
    %11 = vector.extract_strided_slice %10 {offsets = [0, 0], sizes = [64, 128], strides = [1, 1]} : vector<64x256xf32> to vector<64x128xf32>
    %12 = vector.extract_strided_slice %10 {offsets = [0, 128], sizes = [64, 128], strides = [1, 1]} : vector<64x256xf32> to vector<64x128xf32>
    %c0_9 = arith.constant 0 : index
    %c0_10 = arith.constant 0 : index
    %13 = vector.load %arg5[%c0_9, %c0_10] : memref<1x128xf32, #tpu.memory_space<vmem>>, vector<1x128xf32>
    %14 = vector.broadcast %13 : vector<1x128xf32> to vector<64x128xf32>
    %15 = arith.addf %12, %14 : vector<64x128xf32>
    %cst_11 = arith.constant 0.000000e+00 : f32
    %16 = vector.broadcast %cst_11 : f32 to vector<64x128xf32>
    %17 = arith.maximumf %15, %16 : vector<64x128xf32>
    %18 = arith.truncf %17 : vector<64x128xf32> to vector<64x128xbf16>
    %c0_12 = arith.constant 0 : index
    %c0_13 = arith.constant 0 : index
    %19 = vector.load %arg6[%c0_12, %c0_13] : memref<128x128xbf16, #tpu.memory_space<vmem>>, vector<128x128xbf16>
    %cst_14 = arith.constant dense<0.000000e+00> : vector<64x128xf32>
    %20 = tpu.matmul %18, %19, %cst_14 {dimension_numbers = #tpu.dot_dimension_numbers<[1], [0], [0], [1], [0, 0, 1, 1], [], []>} : vector<64x128xbf16>, vector<128x128xbf16>, vector<64x128xf32> -> vector<64x128xf32>
    %21 = arith.addf %11, %20 : vector<64x128xf32>
    %c0_15 = arith.constant 0 : index
    %c0_16 = arith.constant 0 : index
    %22 = vector.load %arg7[%c0_15, %c0_16] : memref<1x128xf32, #tpu.memory_space<vmem>>, vector<1x128xf32>
    %23 = vector.broadcast %22 : vector<1x128xf32> to vector<64x128xf32>
    %24 = arith.addf %21, %23 : vector<64x128xf32>
    %c0_17 = arith.constant 0 : index
    %c0_18 = arith.constant 0 : index
    %25 = vector.load %arg8[%c0_17, %c0_18] : memref<64x128xf32, #tpu.memory_space<vmem>>, vector<64x128xf32>
    tpu.vector_store %arg8[%c0_17, %c0_18], %24 {strides = array<i32>} : memref<64x128xf32, #tpu.memory_space<vmem>>, vector<64x128xf32>,
    return
  }
  func.func @transform_0(%arg0: i32) -> (i32, i32) {
    %c0_i32 = arith.constant 0 : i32
    %c0_i32_0 = arith.constant 0 : i32
    return %arg0, %c0_i32 : i32, i32
  }
  func.func @transform_1(%arg0: i32) -> (i32, i32) {
    %c0_i32 = arith.constant 0 : i32
    %c0_i32_0 = arith.constant 0 : i32
    %c0_i32_1 = arith.constant 0 : i32
    return %c0_i32, %c0_i32_0 : i32, i32
  }
  func.func @transform_2(%arg0: i32) -> (i32, i32) {
    %c0_i32 = arith.constant 0 : i32
    %c0_i32_0 = arith.constant 0 : i32
    %c0_i32_1 = arith.constant 0 : i32
    return %c0_i32, %c0_i32_0 : i32, i32
  }
  func.func @transform_3(%arg0: i32) -> (i32, i32) {
    %c0_i32 = arith.constant 0 : i32
    %c0_i32_0 = arith.constant 0 : i32
    %c0_i32_1 = arith.constant 0 : i32
    return %c0_i32, %c0_i32_0 : i32, i32
  }
  func.func @transform_4(%arg0: i32) -> (i32, i32) {
    %c0_i32 = arith.constant 0 : i32
    %c0_i32_0 = arith.constant 0 : i32
    %c0_i32_1 = arith.constant 0 : i32
    return %c0_i32, %c0_i32_0 : i32, i32
  }
  func.func @transform_5(%arg0: i32) -> (i32, i32) {
    %c0_i32 = arith.constant 0 : i32
    %c0_i32_0 = arith.constant 0 : i32
    %c0_i32_1 = arith.constant 0 : i32
    return %c0_i32, %c0_i32_0 : i32, i32
  }
  func.func @transform_6(%arg0: i32) -> (i32, i32) {
    %c0_i32 = arith.constant 0 : i32
    %c0_i32_0 = arith.constant 0 : i32
    %c0_i32_1 = arith.constant 0 : i32
    return %c0_i32, %c0_i32_0 : i32, i32
  }
  func.func @transform_7(%arg0: i32) -> (i32, i32) {
    %c0_i32 = arith.constant 0 : i32
    %c0_i32_0 = arith.constant 0 : i32
    return %arg0, %c0_i32 : i32, i32
  }
}

module attributes {stable_mosaic.version = 11 : i64} {
  func.func @fused_encoder_kernel(%arg0: i32, %arg1: memref<64x128xbf16, #tpu.memory_space<vmem>>, %arg2: memref<128x128xbf16, #tpu.memory_space<vmem>>, %arg3: memref<1x128xf32, #tpu.memory_space<vmem>>, %arg4: memref<128x256xbf16, #tpu.memory_space<vmem>>, %arg5: memref<1x128xf32, #tpu.memory_space<vmem>>, %arg6: memref<128x128xbf16, #tpu.memory_space<vmem>>, %arg7: memref<1x128xf32, #tpu.memory_space<vmem>>, %arg8: memref<64x128xf32, #tpu.memory_space<vmem>>) attributes {dimension_semantics = [#tpu.dimension_semantics<parallel>], iteration_bounds = array<i64: 2>, scalar_prefetch = 0 : i64, scratch_operands = 0 : i64, tpu.core_type = #tpu.core_type<tc>, window_params = [{transform_indices = @transform_0, window_bounds = array<i64: 64, 128>}, {pipeline_mode = #tpu.pipeline_mode<synchronous>, transform_indices = @transform_1, window_bounds = array<i64: 128, 128>}, {pipeline_mode = #tpu.pipeline_mode<synchronous>, transform_indices = @transform_2, window_bounds = array<i64: 1, 128>}, {pipeline_mode = #tpu.pipeline_mode<synchronous>, transform_indices = @transform_3, window_bounds = array<i64: 128, 256>}, {pipeline_mode = #tpu.pipeline_mode<synchronous>, transform_indices = @transform_4, window_bounds = array<i64: 1, 128>}, {pipeline_mode = #tpu.pipeline_mode<synchronous>, transform_indices = @transform_5, window_bounds = array<i64: 128, 128>}, {pipeline_mode = #tpu.pipeline_mode<synchronous>, transform_indices = @transform_6, window_bounds = array<i64: 1, 128>}, {transform_indices = @transform_7, window_bounds = array<i64: 64, 128>}]} {
    %c0 = arith.constant 0 : index
    %c0_0 = arith.constant 0 : index
    %0 = vector.load %arg1[%c0, %c0_0] : memref<64x128xbf16, #tpu.memory_space<vmem>>, vector<64x128xbf16>
    %c0_1 = arith.constant 0 : index
    %c0_2 = arith.constant 0 : index
    %1 = vector.load %arg2[%c0_1, %c0_2] : memref<128x128xbf16, #tpu.memory_space<vmem>>, vector<128x128xbf16>
    %cst = arith.constant dense<0.000000e+00> : vector<64x128xf32>
    %2 = tpu.matmul %0, %1, %cst {dimension_numbers = #tpu.dot_dimension_numbers<[1], [0], [0], [1], [0, 0, 1, 1], [], []>} : vector<64x128xbf16>, vector<128x128xbf16>, vector<64x128xf32> -> vector<64x128xf32>
    %c0_3 = arith.constant 0 : index
    %c0_4 = arith.constant 0 : index
    %3 = vector.load %arg3[%c0_3, %c0_4] : memref<1x128xf32, #tpu.memory_space<vmem>>, vector<1x128xf32>
    %4 = vector.broadcast %3 : vector<1x128xf32> to vector<64x128xf32>
    %5 = arith.addf %2, %4 : vector<64x128xf32>
    %cst_5 = arith.constant 0.000000e+00 : f32
    %6 = vector.broadcast %cst_5 : f32 to vector<64x128xf32>
    %7 = arith.maximumf %5, %6 : vector<64x128xf32>
    %8 = arith.truncf %7 : vector<64x128xf32> to vector<64x128xbf16>
    %c0_6 = arith.constant 0 : index
    %c0_7 = arith.constant 0 : index
    %9 = vector.load %arg4[%c0_6, %c0_7] : memref<128x256xbf16, #tpu.memory_space<vmem>>, vector<128x256xbf16>
    %cst_8 = arith.constant dense<0.000000e+00> : vector<64x256xf32>
    %10 = tpu.matmul %8, %9, %cst_8 {dimension_numbers = #tpu.dot_dimension_numbers<[1], [0], [0], [1], [0, 0, 1, 1], [], []>} : vector<64x128xbf16>, vector<128x256xbf16>, vector<64x256xf32> -> vector<64x256xf32>
    %11 = vector.extract_strided_slice %10 {offsets = [0, 0], sizes = [64, 128], strides = [1, 1]} : vector<64x256xf32> to vector<64x128xf32>
    %12 = vector.extract_strided_slice %10 {offsets = [0, 128], sizes = [64, 128], strides = [1, 1]} : vector<64x256xf32> to vector<64x128xf32>
    %c0_9 = arith.constant 0 : index
    %c0_10 = arith.constant 0 : index
    %13 = vector.load %arg5[%c0_9, %c0_10] : memref<1x128xf32, #tpu.memory_space<vmem>>, vector<1x128xf32>
    %14 = vector.broadcast %13 : vector<1x128xf32> to vector<64x128xf32>
    %15 = arith.addf %12, %14 : vector<64x128xf32>
    %cst_11 = arith.constant 0.000000e+00 : f32
    %16 = vector.broadcast %cst_11 : f32 to vector<64x128xf32>
    %17 = arith.maximumf %15, %16 : vector<64x128xf32>
    %18 = arith.truncf %17 : vector<64x128xf32> to vector<64x128xbf16>
    %c0_12 = arith.constant 0 : index
    %c0_13 = arith.constant 0 : index
    %19 = vector.load %arg6[%c0_12, %c0_13] : memref<128x128xbf16, #tpu.memory_space<vmem>>, vector<128x128xbf16>
    %cst_14 = arith.constant dense<0.000000e+00> : vector<64x128xf32>
    %20 = tpu.matmul %18, %19, %cst_14 {dimension_numbers = #tpu.dot_dimension_numbers<[1], [0], [0], [1], [0, 0, 1, 1], [], []>} : vector<64x128xbf16>, vector<128x128xbf16>, vector<64x128xf32> -> vector<64x128xf32>
    %21 = arith.addf %11, %20 : vector<64x128xf32>
    %c0_15 = arith.constant 0 : index
    %c0_16 = arith.constant 0 : index
    %22 = vector.load %arg7[%c0_15, %c0_16] : memref<1x128xf32, #tpu.memory_space<vmem>>, vector<1x128xf32>
    %23 = vector.broadcast %22 : vector<1x128xf32> to vector<64x128xf32>
    %24 = arith.addf %21, %23 : vector<64x128xf32>
    %c0_17 = arith.constant 0 : index
    %c0_18 = arith.constant 0 : index
    %25 = vector.load %arg8[%c0_17, %c0_18] : memref<64x128xf32, #tpu.memory_space<vmem>>, vector<64x128xf32>
    tpu.vector_store %arg8[%c0_17, %c0_18], %24 {strides = array<i32>} : memref<64x128xf32, #tpu.memory_space<vmem>>, vector<64x128xf32>,
    return
  }
  func.func @transform_0(%arg0: i32) -> (i32, i32) {
    %c0_i32 = arith.constant 0 : i32
    %c0_i32_0 = arith.constant 0 : i32
    return %arg0, %c0_i32 : i32, i32
  }
  func.func @transform_1(%arg0: i32) -> (i32, i32) {
    %c0_i32 = arith.constant 0 : i32
    %c0_i32_0 = arith.constant 0 : i32
    %c0_i32_1 = arith.constant 0 : i32
    return %c0_i32, %c0_i32_0 : i32, i32
  }
  func.func @transform_2(%arg0: i32) -> (i32, i32) {
    %c0_i32 = arith.constant 0 : i32
    %c0_i32_0 = arith.constant 0 : i32
    %c0_i32_1 = arith.constant 0 : i32
    return %c0_i32, %c0_i32_0 : i32, i32
  }
  func.func @transform_3(%arg0: i32) -> (i32, i32) {
    %c0_i32 = arith.constant 0 : i32
    %c0_i32_0 = arith.constant 0 : i32
    %c0_i32_1 = arith.constant 0 : i32
    return %c0_i32, %c0_i32_0 : i32, i32
  }
  func.func @transform_4(%arg0: i32) -> (i32, i32) {
    %c0_i32 = arith.constant 0 : i32
    %c0_i32_0 = arith.constant 0 : i32
    %c0_i32_1 = arith.constant 0 : i32
    return %c0_i32, %c0_i32_0 : i32, i32
  }
  func.func @transform_5(%arg0: i32) -> (i32, i32) {
    %c0_i32 = arith.constant 0 : i32
    %c0_i32_0 = arith.constant 0 : i32
    %c0_i32_1 = arith.constant 0 : i32
    return %c0_i32, %c0_i32_0 : i32, i32
  }
  func.func @transform_6(%arg0: i32) -> (i32, i32) {
    %c0_i32 = arith.constant 0 : i32
    %c0_i32_0 = arith.constant 0 : i32
    %c0_i32_1 = arith.constant 0 : i32
    return %c0_i32, %c0_i32_0 : i32, i32
  }
  func.func @transform_7(%arg0: i32) -> (i32, i32) {
    %c0_i32 = arith.constant 0 : i32
    %c0_i32_0 = arith.constant 0 : i32
    return %arg0, %c0_i32 : i32, i32
  }
}

</mosaic_0001>

<llo_original>
// kernel: encoder_image_full_forward.1
$region0: #{encoder_image_full_forward.1}
  #allocation0 [shape = 'u32[]', space=smem, size = 0x4, offset = 0x4, fixed_abs, tag = 'smem constant byte address 0x4 - core index']
  #allocation1 [shape = 'u32[144,128]{1,0:T(1,128)}', space=vmem, size = 0x12000, scoped, tag = 'internal scratch']
  %s0 = inlined_call_operand.vmem [shape: bf16[128,128], index: 0, kind: input, shape index: {}]
  %s1 = inlined_call_operand.vmem [shape: bf16[128,128], index: 1, kind: input, shape index: {}]
  %s2 = inlined_call_operand.vmem [shape: f32[1,128], index: 2, kind: input, shape index: {}]
  %s3 = inlined_call_operand.vmem [shape: bf16[128,256], index: 3, kind: input, shape index: {}]
  %s4 = inlined_call_operand.vmem [shape: f32[1,128], index: 4, kind: input, shape index: {}]
  %s5 = inlined_call_operand.vmem [shape: bf16[128,128], index: 5, kind: input, shape index: {}]
  %s6 = inlined_call_operand.vmem [shape: f32[1,128], index: 6, kind: input, shape index: {}]
  %s7 = inlined_call_operand.hbm [shape: f32[128,128], index: 7, kind: output, shape index: {}]
  %s8 = sld [smem:[#allocation0]]
  $region61: #{encoder_image_full_forward.1} parent=0
    _
  %s10 = ssub.s32 1, %s8
  %s11 = scalar_select 0, %s10, %s8
  $region1: #{encoder_image_full_forward.1} parent=0
    #allocation2 [shape = 'u8[65536]{0}', space=vmem, size = 0x10000, scoped, tag = 'output window, operand 0']
    #allocation3 [shape = 's32[2]{0}', space=sflag, size = 0x8, scoped, tag = 'scoped memory for encoder_image_full_forward.1']
    %12 = vsyncpa [#allocation3], 0
    %s13 = scalar_lea.sflag [#allocation3], 1
    %14 = vsyncpa %s13, 0
    loop: start=0, step=1, limit=4
    $region2: #{encoder_image_full_forward.1} parent=1 // loop_pre_header
      _
    $region3: #{encoder_image_full_forward.1} parent=1 // loop_header
      %s16 = sphi 0, %s20
      %p17 = scmp.ge.s32.totalorder %s16, 4
      %s26 = sphi 0, %s28
      %s29 = sphi 0, %s26
      %s30 = sphi 0, %s29
      %s46 = sphi 0, %s30
      %s50 = sphi 0, %s50
      %s52 = sphi 0, %s50
      %s53 = sphi 0, %s52
      %s67 = sphi 0, %s53
      %s71 = sphi 0, %s71
      %s73 = sphi 0, %s71
      %s74 = sphi 0, %s73
      %s88 = sphi 0, %s74
      %s92 = sphi 0, %s92
      %s94 = sphi 0, %s92
      %s95 = sphi 0, %s94
      %s109 = sphi 0, %s95
      %s113 = sphi 0, %s113
      %s115 = sphi 0, %s113
      %s116 = sphi 0, %s115
      %s130 = sphi 0, %s116
      %s134 = sphi 0, %s134
      %s136 = sphi 0, %s134
      %s137 = sphi 0, %s136
      %s151 = sphi 0, %s137
      %s155 = sphi 0, %s155
      %s157 = sphi 0, %s155
      %s158 = sphi 0, %s157
      %s172 = sphi 0, %s158
      %s178 = sphi 0, %s180
      %s181 = sphi 0, %s178
      %s182 = sphi 0, %s181
      %s198 = sphi 0, %s182
    $region4: #{encoder_image_full_forward.1} parent=1 // loop_header_branch
      %19 = sbr.rel (%p17) target = $region8
    $region5: #{encoder_image_full_forward.1} parent=1 // loop_body
      %s21 = ssub.s32 %s16, 1
      %s22 = ssub.s32 %s16, 2
      %s23 = sadd.s32 %s16, 1
      %s24 = ssub.s32 %s16, %s23
      %p25 = scmp.eq.s32.totalorder %s24, 0
      %s27 = sadd.s32 %s26, 1
      %s28 = scalar_select %p25, %s26, %s27
      %p31 = pneg %p25
      %p32 = scmp.eq.s32.totalorder %s16, 1
      %p33 = por %p31, %p32
      %p34 = scmp.ne.s32.totalorder %s26, %s29
      %p35 = scmp.eq.s32.totalorder %s16, 0
      %p36 = por %p34, %p35
      %p37 = scmp.ne.s32.totalorder %s26, %s29
      %p38 = scmp.eq.s32.totalorder %s21, 1
      %p39 = por %p37, %p38
      %p40 = scmp.ne.s32.totalorder %s29, %s30
      %p41 = scmp.eq.s32.totalorder %s21, 0
      %p42 = por %p40, %p41
      %p43 = scmp.ne.s32.totalorder %s29, %s30
      %p44 = scmp.eq.s32.totalorder %s22, 1
      %p45 = por %p43, %p44
      %p47 = scmp.ne.s32.totalorder %s30, %s46
      %p48 = scmp.eq.s32.totalorder %s22, 0
      %p49 = por %p47, %p48
      %s51 = sadd.s32 %s50, 1
      %p54 = scmp.eq.s32.totalorder %s16, 1
      %p55 = scmp.ne.s32.totalorder %s50, %s52
      %p56 = scmp.eq.s32.totalorder %s16, 0
      %p57 = por %p55, %p56
      %p58 = scmp.ne.s32.totalorder %s50, %s52
      %p59 = scmp.eq.s32.totalorder %s21, 1
      %p60 = por %p58, %p59
      %p61 = scmp.ne.s32.totalorder %s52, %s53
      %p62 = scmp.eq.s32.totalorder %s21, 0
      %p63 = por %p61, %p62
      %p64 = scmp.ne.s32.totalorder %s52, %s53
      %p65 = scmp.eq.s32.totalorder %s22, 1
      %p66 = por %p64, %p65
      %p68 = scmp.ne.s32.totalorder %s53, %s67
      %p69 = scmp.eq.s32.totalorder %s22, 0
      %p70 = por %p68, %p69
      %s72 = sadd.s32 %s71, 1
      %p75 = scmp.eq.s32.totalorder %s16, 1
      %p76 = scmp.ne.s32.totalorder %s71, %s73
      %p77 = scmp.eq.s32.totalorder %s16, 0
      %p78 = por %p76, %p77
      %p79 = scmp.ne.s32.totalorder %s71, %s73
      %p80 = scmp.eq.s32.totalorder %s21, 1
      %p81 = por %p79, %p80
      %p82 = scmp.ne.s32.totalorder %s73, %s74
      %p83 = scmp.eq.s32.totalorder %s21, 0
      %p84 = por %p82, %p83
      %p85 = scmp.ne.s32.totalorder %s73, %s74
      %p86 = scmp.eq.s32.totalorder %s22, 1
      %p87 = por %p85, %p86
      %p89 = scmp.ne.s32.totalorder %s74, %s88
      %p90 = scmp.eq.s32.totalorder %s22, 0
      %p91 = por %p89, %p90
      %s93 = sadd.s32 %s92, 1
      %p96 = scmp.eq.s32.totalorder %s16, 1
      %p97 = scmp.ne.s32.totalorder %s92, %s94
      %p98 = scmp.eq.s32.totalorder %s16, 0
      %p99 = por %p97, %p98
      %p100 = scmp.ne.s32.totalorder %s92, %s94
      %p101 = scmp.eq.s32.totalorder %s21, 1
      %p102 = por %p100, %p101
      %p103 = scmp.ne.s32.totalorder %s94, %s95
      %p104 = scmp.eq.s32.totalorder %s21, 0
      %p105 = por %p103, %p104
      %p106 = scmp.ne.s32.totalorder %s94, %s95
      %p107 = scmp.eq.s32.totalorder %s22, 1
      %p108 = por %p106, %p107
      %p110 = scmp.ne.s32.totalorder %s95, %s109
      %p111 = scmp.eq.s32.totalorder %s22, 0
      %p112 = por %p110, %p111
      %s114 = sadd.s32 %s113, 1
      %p117 = scmp.eq.s32.totalorder %s16, 1
      %p118 = scmp.ne.s32.totalorder %s113, %s115
      %p119 = scmp.eq.s32.totalorder %s16, 0
      %p120 = por %p118, %p119
      %p121 = scmp.ne.s32.totalorder %s113, %s115
      %p122 = scmp.eq.s32.totalorder %s21, 1
      %p123 = por %p121, %p122
      %p124 = scmp.ne.s32.totalorder %s115, %s116
      %p125 = scmp.eq.s32.totalorder %s21, 0
      %p126 = por %p124, %p125
      %p127 = scmp.ne.s32.totalorder %s115, %s116
      %p128 = scmp.eq.s32.totalorder %s22, 1
      %p129 = por %p127, %p128
      %p131 = scmp.ne.s32.totalorder %s116, %s130
      %p132 = scmp.eq.s32.totalorder %s22, 0
      %p133 = por %p131, %p132
      %s135 = sadd.s32 %s134, 1
      %p138 = scmp.eq.s32.totalorder %s16, 1
      %p139 = scmp.ne.s32.totalorder %s134, %s136
      %p140 = scmp.eq.s32.totalorder %s16, 0
      %p141 = por %p139, %p140
      %p142 = scmp.ne.s32.totalorder %s134, %s136
      %p143 = scmp.eq.s32.totalorder %s21, 1
      %p144 = por %p142, %p143
      %p145 = scmp.ne.s32.totalorder %s136, %s137
      %p146 = scmp.eq.s32.totalorder %s21, 0
      %p147 = por %p145, %p146
      %p148 = scmp.ne.s32.totalorder %s136, %s137
      %p149 = scmp.eq.s32.totalorder %s22, 1
      %p150 = por %p148, %p149
      %p152 = scmp.ne.s32.totalorder %s137, %s151
      %p153 = scmp.eq.s32.totalorder %s22, 0
      %p154 = por %p152, %p153
      %s156 = sadd.s32 %s155, 1
      %p159 = scmp.eq.s32.totalorder %s16, 1
      %p160 = scmp.ne.s32.totalorder %s155, %s157
      %p161 = scmp.eq.s32.totalorder %s16, 0
      %p162 = por %p160, %p161
      %p163 = scmp.ne.s32.totalorder %s155, %s157
      %p164 = scmp.eq.s32.totalorder %s21, 1
      %p165 = por %p163, %p164
      %p166 = scmp.ne.s32.totalorder %s157, %s158
      %p167 = scmp.eq.s32.totalorder %s21, 0
      %p168 = por %p166, %p167
      %p169 = scmp.ne.s32.totalorder %s157, %s158
      %p170 = scmp.eq.s32.totalorder %s22, 1
      %p171 = por %p169, %p170
      %p173 = scmp.ne.s32.totalorder %s158, %s172
      %p174 = scmp.eq.s32.totalorder %s22, 0
      %p175 = por %p173, %p174
      %s176 = ssub.s32 %s16, %s23
      %p177 = scmp.eq.s32.totalorder %s176, 0
      %s179 = sadd.s32 %s178, 1
      %s180 = scalar_select %p177, %s178, %s179
      %p183 = pneg %p177
      %p184 = scmp.eq.s32.totalorder %s16, 1
      %p185 = por %p183, %p184
      %p186 = scmp.ne.s32.totalorder %s178, %s181
      %p187 = scmp.eq.s32.totalorder %s16, 0
      %p188 = por %p186, %p187
      %p189 = scmp.ne.s32.totalorder %s178, %s181
      %p190 = scmp.eq.s32.totalorder %s21, 1
      %p191 = por %p189, %p190
      %p192 = scmp.ne.s32.totalorder %s181, %s182
      %p193 = scmp.eq.s32.totalorder %s21, 0
      %p194 = por %p192, %p193
      %p195 = scmp.ne.s32.totalorder %s181, %s182
      %p196 = scmp.eq.s32.totalorder %s22, 1
      %p197 = por %p195, %p196
      %p199 = scmp.ne.s32.totalorder %s182, %s198
      %p200 = scmp.eq.s32.totalorder %s22, 0
      %p201 = por %p199, %p200
      %p202 = scmp.le.s32.totalorder 1, %s16
      %p203 = scmp.lt.s32.totalorder %s16, 3
      %p204 = pnand %p202, %p203
      %p205 = pneg %p204
      // Predicated region
      $region9: #{encoder_image_full_forward.1} parent=5 // pred_check
        _
      $region10: #{encoder_image_full_forward.1} parent=5 // pred_check_branch
        %207 = sbr.rel (%p204) target = $region12
      $region11: #{encoder_image_full_forward.1} parent=5 // pred_region
        %s208 = ssub.s32 %s16, 1
        // Predicated region
        $region13: #{encoder_image_full_forward.1} parent=11 // pred_check
          %p209 = pneg %p63
        $region14: #{encoder_image_full_forward.1} parent=11 // pred_check_branch
          %211 = sbr.rel (%p209) target = $region16
        $region15: #{encoder_image_full_forward.1} parent=11 // pred_region
          _
        $region16: #{encoder_image_full_forward.1} parent=11 // pred_fallthru
          _
        // Predicated region
        $region17: #{encoder_image_full_forward.1} parent=11 // pred_check
          %p212 = pneg %p84
        $region18: #{encoder_image_full_forward.1} parent=11 // pred_check_branch
          %214 = sbr.rel (%p212) target = $region20
        $region19: #{encoder_image_full_forward.1} parent=11 // pred_region
          _
        $region20: #{encoder_image_full_forward.1} parent=11 // pred_fallthru
          _
        // Predicated region
        $region21: #{encoder_image_full_forward.1} parent=11 // pred_check
          %p215 = pneg %p105
        $region22: #{encoder_image_full_forward.1} parent=11 // pred_check_branch
          %217 = sbr.rel (%p215) target = $region24
        $region23: #{encoder_image_full_forward.1} parent=11 // pred_region
          _
        $region24: #{encoder_image_full_forward.1} parent=11 // pred_fallthru
          _
        // Predicated region
        $region25: #{encoder_image_full_forward.1} parent=11 // pred_check
          %p218 = pneg %p126
        $region26: #{encoder_image_full_forward.1} parent=11 // pred_check_branch
          %220 = sbr.rel (%p218) target = $region28
        $region27: #{encoder_image_full_forward.1} parent=11 // pred_region
          _
        $region28: #{encoder_image_full_forward.1} parent=11 // pred_fallthru
          _
        // Predicated region
        $region29: #{encoder_image_full_forward.1} parent=11 // pred_check
          %p221 = pneg %p147
        $region30: #{encoder_image_full_forward.1} parent=11 // pred_check_branch
          %223 = sbr.rel (%p221) target = $region32
        $region31: #{encoder_image_full_forward.1} parent=11 // pred_region
          _
        $region32: #{encoder_image_full_forward.1} parent=11 // pred_fallthru
          _
        // Predicated region
        $region33: #{encoder_image_full_forward.1} parent=11 // pred_check
          %p224 = pneg %p168
        $region34: #{encoder_image_full_forward.1} parent=11 // pred_check_branch
          %226 = sbr.rel (%p224) target = $region36
        $region35: #{encoder_image_full_forward.1} parent=11 // pred_region
          _
        $region36: #{encoder_image_full_forward.1} parent=11 // pred_fallthru
          _
      $region12: #{encoder_image_full_forward.1} parent=5 // pred_fallthru
        _
      %p227 = scmp.lt.s32.totalorder %s16, 2
      // Predicated region
      $region37: #{encoder_image_full_forward.1} parent=5 // pred_check
        %p228 = pneg %p227
      $region38: #{encoder_image_full_forward.1} parent=5 // pred_check_branch
        %230 = sbr.rel (%p228) target = $region40
      $region39: #{encoder_image_full_forward.1} parent=5 // pred_region
        // Predicated region
        $region41: #{encoder_image_full_forward.1} parent=39 // pred_check
          %p231 = pneg %p36
        $region42: #{encoder_image_full_forward.1} parent=39 // pred_check_branch
          %233 = sbr.rel (%p231) target = $region44
        $region43: #{encoder_image_full_forward.1} parent=39 // pred_region
          %s234 = smul.u32 8, %s16
          %p235 = scmp.lt.s32.totalorder %s234, 15
          %s236 = scalar_select %p235, %s234, 15
          %s237 = smul.addr %s236, 4
          %s238 = scalar_lea.vmem %s0, %s237
          %s239 = smul.u32 8, %s16
        $region44: #{encoder_image_full_forward.1} parent=39 // pred_fallthru
          _
      $region40: #{encoder_image_full_forward.1} parent=5 // pred_fallthru
        _
      %p240 = scmp.le.s32.totalorder 1, %s16
      %p241 = scmp.lt.s32.totalorder %s16, 3
      %p242 = pnand %p240, %p241
      %p243 = pneg %p242
      // Predicated region
      $region45: #{encoder_image_full_forward.1} parent=5 // pred_check
        _
      $region46: #{encoder_image_full_forward.1} parent=5 // pred_check_branch
        %245 = sbr.rel (%p242) target = $region48
      $region47: #{encoder_image_full_forward.1} parent=5 // pred_region
        %s246 = ssub.s32 %s16, 1
        %s247 = smul.u32 8, %s21
        %p248 = scmp.lt.s32.totalorder %s247, 15
        %s249 = scalar_select %p248, %s247, 15
        %s250 = smul.addr %s249, 4
        %s251 = scalar_lea.vmem %s0, %s250
        %p252 = pneg %p42
        %p253 = pneg %p39
        %p254 = pneg %p63
        %p255 = pneg %p60
        %p256 = pneg %p84
        %p257 = pneg %p81
        %p258 = pneg %p105
        %p259 = pneg %p102
        %p260 = pneg %p126
        %p261 = pneg %p123
        %p262 = pneg %p147
        %p263 = pneg %p144
        %p264 = pneg %p168
        %p265 = pneg %p165
        %p266 = pneg %p194
        %p267 = pneg %p191
        %s268 = sand.u32 %s181, 1
        %s269 = scalar_lea.sflag [#allocation3], %s268
        %s270 = sand.u32 %s181, 1
        %s271 = smul.addr %s270, 64
        %s272 = scalar_lea.vmem [#allocation2], %s271
        %s273 = smul.u32 8, %s21
        %p274 = scmp.lt.s32.totalorder %s273, 15
        %s275 = scalar_select %p274, %s273, 15
        %s276 = smul.addr %s275, 4
        %s277 = scalar_lea.vmem %s0, %s276
        %s278 = smul.u32 8, %s21
        %s279 = smul.u32 8, %s21
        %v281 = vld [vmem:[%s277] sm:$0xf]
        %v282 = vld [vmem:[%s277 + $0x4] sm:$0xf]
        %v283 = vld [vmem:[%s277 + $0x8] sm:$0xf]
        %v284 = vld [vmem:[%s277 + $0xc] sm:$0xf]
        %v285 = vld [vmem:[%s277 + $0x10] sm:$0xf]
        %v286 = vld [vmem:[%s277 + $0x14] sm:$0xf]
        %v287 = vld [vmem:[%s277 + $0x18] sm:$0xf]
        %v288 = vld [vmem:[%s277 + $0x1c] sm:$0xf]
        %v289 = vld [vmem:[%s1] sm:$0xf]
        %v290 = vld [vmem:[%s1 + $0x4] sm:$0xf]
        %v291 = vld [vmem:[%s1 + $0x8] sm:$0xf]
        %v292 = vld [vmem:[%s1 + $0xc] sm:$0xf]
        %v293 = vld [vmem:[%s1 + $0x10] sm:$0xf]
        %v294 = vld [vmem:[%s1 + $0x14] sm:$0xf]
        %v295 = vld [vmem:[%s1 + $0x18] sm:$0xf]
        %v296 = vld [vmem:[%s1 + $0x1c] sm:$0xf]
        %v297 = vld [vmem:[%s1 + $0x20] sm:$0xf]
        %v298 = vld [vmem:[%s1 + $0x24] sm:$0xf]
        %v299 = vld [vmem:[%s1 + $0x28] sm:$0xf]
        %v300 = vld [vmem:[%s1 + $0x2c] sm:$0xf]
        %v301 = vld [vmem:[%s1 + $0x30] sm:$0xf]
        %v302 = vld [vmem:[%s1 + $0x34] sm:$0xf]
        %v303 = vld [vmem:[%s1 + $0x38] sm:$0xf]
        %v304 = vld [vmem:[%s1 + $0x3c] sm:$0xf]
        %v305 = vld [vmem:[%s2] sm:$0x1]
        %v307 = vlaneseq
        %v308 = vshrl.u32 %v307, 7
        %v309 = vsub.s32 0, %v308
        %v310 = vrot.slane %v305, %v309
        %v320 = vunpack.c.l.b16 %v281
        %v321 = vunpack.c.l.b16 %v282
        %v322 = vunpack.c.l.b16 %v283
        %v323 = vunpack.c.l.b16 %v284
        %v324 = vunpack.c.l.b16 %v285
        %v325 = vunpack.c.l.b16 %v286
        %v326 = vunpack.c.l.b16 %v287
        %v327 = vunpack.c.l.b16 %v288
        %v328 = vpack.c.b16 %v321, %v320
        %v329 = vpack.c.b16 %v323, %v322
        %v330 = vpack.c.b16 %v325, %v324
        %v331 = vpack.c.b16 %v327, %v326
        %v352 = vunpack.c.l.b16 %v289
        %v353 = vunpack.c.l.b16 %v290
        %v354 = vunpack.c.l.b16 %v291
        %v355 = vunpack.c.l.b16 %v292
        %v356 = vunpack.c.l.b16 %v293
        %v357 = vunpack.c.l.b16 %v294
        %v358 = vunpack.c.l.b16 %v295
        %v359 = vunpack.c.l.b16 %v296
        %v360 = vunpack.c.l.b16 %v297
        %v361 = vunpack.c.l.b16 %v298
        %v362 = vunpack.c.l.b16 %v299
        %v363 = vunpack.c.l.b16 %v300
        %v364 = vunpack.c.l.b16 %v301
        %v365 = vunpack.c.l.b16 %v302
        %v366 = vunpack.c.l.b16 %v303
        %v367 = vunpack.c.l.b16 %v304
        %v368 = vpack.c.b16 %v353, %v352
        %v369 = vpack.c.b16 %v355, %v354
        %v370 = vpack.c.b16 %v357, %v356
        %v371 = vpack.c.b16 %v359, %v358
        %v372 = vpack.c.b16 %v361, %v360
        %v373 = vpack.c.b16 %v363, %v362
        %v374 = vpack.c.b16 %v365, %v364
        %v375 = vpack.c.b16 %v367, %v366
        %384 = vmatprep.subr.bf16.mxu0 0
        %385 = vmatpush1.bf16.msra.mxu0 %v368
        %386 = vmatprep.subr.bf16.mxu0 0
        %387 = vmatpush1.bf16.msra.mxu0 %v369
        %388 = vmatprep.subr.bf16.mxu0 0
        %389 = vmatpush1.bf16.msra.mxu0 %v370
        %390 = vmatprep.subr.bf16.mxu0 0
        %391 = vmatpush1.bf16.msra.mxu0 %v371
        %392 = vmatprep.subr.bf16.mxu0 0
        %393 = vmatpush1.bf16.msra.mxu0 %v372
        %394 = vmatprep.subr.bf16.mxu0 0
        %395 = vmatpush1.bf16.msra.mxu0 %v373
        %396 = vmatprep.subr.bf16.mxu0 0
        %397 = vmatpush1.bf16.msra.mxu0 %v374
        %398 = vmatprep.subr.bf16.mxu0 0
        %399 = vmatpush1.bf16.msra.mxu0 %v375
        %400 = vmatprep.subr.bf16.mxu0 0
        %401 = vmatpush1.bf16.msra.mxu0 0
        %402 = vmatprep.subr.bf16.mxu0 0
        %403 = vmatpush1.bf16.msra.mxu0 0
        %404 = vmatprep.subr.bf16.mxu0 0
        %405 = vmatpush1.bf16.msra.mxu0 0
        %406 = vmatprep.subr.bf16.mxu0 0
        %407 = vmatpush1.bf16.msra.mxu0 0
        %408 = vmatprep.subr.bf16.mxu0 0
        %409 = vmatpush1.bf16.msra.mxu0 0
        %410 = vmatprep.subr.bf16.mxu0 0
        %411 = vmatpush1.bf16.msra.mxu0 0
        %412 = vmatprep.subr.bf16.mxu0 0
        %413 = vmatpush1.bf16.msra.mxu0 0
        %414 = vmatprep.subr.bf16.mxu0 0
        %415 = vmatpush1.bf16.msra.mxu0 0
        %416 = vmatprep.mubr.bf16.mxu0 0
        %417 = vmatmul.mubr.bf16.gmra.mrb[0].mxu0 %v328
        %v418 = vpop.f32.mrb[0].mxu0
        %v419 = vadd.f32 %v310, %v418
        %v420 = vpop.f32.mrb[0].mxu0
        %v421 = vpop.f32.mrb[0].mxu0
        %v422 = vadd.f32 %v310, %v421
        %v423 = vpop.f32.mrb[0].mxu0
        %424 = vmatprep.mubr.bf16.mxu0 0
        %425 = vmatmul.mubr.bf16.gmra.mrb[0].mxu0 %v329
        %v426 = vpop.f32.mrb[0].mxu0
        %v427 = vadd.f32 %v310, %v426
        %v428 = vpop.f32.mrb[0].mxu0
        %v429 = vpop.f32.mrb[0].mxu0
        %v430 = vadd.f32 %v310, %v429
        %v431 = vpop.f32.mrb[0].mxu0
        %432 = vmatprep.mubr.bf16.mxu0 0
        %433 = vmatmul.mubr.bf16.gmra.mrb[0].mxu0 %v330
        %v434 = vpop.f32.mrb[0].mxu0
        %v435 = vadd.f32 %v310, %v434
        %v436 = vpop.f32.mrb[0].mxu0
        %v437 = vpop.f32.mrb[0].mxu0
        %v438 = vadd.f32 %v310, %v437
        %v439 = vpop.f32.mrb[0].mxu0
        %440 = vmatprep.mubr.bf16.mxu0 0
        %441 = vmatmul.mubr.bf16.gmra.mrb[0].mxu0 %v331
        %v442 = vpop.f32.mrb[0].mxu0
        %v443 = vadd.f32 %v310, %v442
        %v444 = vpop.f32.mrb[0].mxu0
        %v445 = vpop.f32.mrb[0].mxu0
        %v446 = vadd.f32 %v310, %v445
        %v447 = vpop.f32.mrb[0].mxu0
        %448 = vdwg.mxu0
        %v449 = vmax.f32 %v419, 0.0
        %v450 = vmax.f32 %v422, 0.0
        %v451 = vmax.f32 %v427, 0.0
        %v452 = vmax.f32 %v430, 0.0
        %v453 = vmax.f32 %v435, 0.0
        %v454 = vmax.f32 %v438, 0.0
        %v455 = vmax.f32 %v443, 0.0
        %v456 = vmax.f32 %v446, 0.0
        %v457 = vpack.c.bf16 %v450, %v449
        %v458 = vpack.c.bf16 %v452, %v451
        %v459 = vpack.c.bf16 %v454, %v453
        %v460 = vpack.c.bf16 %v456, %v455
        %v461 = vld [vmem:[%s3] sm:$0xff]
        %v462 = vld [vmem:[%s3 + $0x8] sm:$0xff]
        %v463 = vld [vmem:[%s3 + $0x10] sm:$0xff]
        %v464 = vld [vmem:[%s3 + $0x18] sm:$0xff]
        %v465 = vld [vmem:[%s3 + $0x20] sm:$0xff]
        %v466 = vld [vmem:[%s3 + $0x28] sm:$0xff]
        %v467 = vld [vmem:[%s3 + $0x30] sm:$0xff]
        %v468 = vld [vmem:[%s3 + $0x38] sm:$0xff]
        %v469 = vld [vmem:[%s3 + $0x40] sm:$0xff]
        %v470 = vld [vmem:[%s3 + $0x48] sm:$0xff]
        %v471 = vld [vmem:[%s3 + $0x50] sm:$0xff]
        %v472 = vld [vmem:[%s3 + $0x58] sm:$0xff]
        %v473 = vld [vmem:[%s3 + $0x60] sm:$0xff]
        %v474 = vld [vmem:[%s3 + $0x68] sm:$0xff]
        %v475 = vld [vmem:[%s3 + $0x70] sm:$0xff]
        %v476 = vld [vmem:[%s3 + $0x78] sm:$0xff]
        %v493 = vunpack.c.l.b16 %v461
        %v494 = vunpack.c.h.b16 %v461
        %v495 = vunpack.c.l.b16 %v462
        %v496 = vunpack.c.h.b16 %v462
        %v497 = vunpack.c.l.b16 %v463
        %v498 = vunpack.c.h.b16 %v463
        %v499 = vunpack.c.l.b16 %v464
        %v500 = vunpack.c.h.b16 %v464
        %v501 = vunpack.c.l.b16 %v465
        %v502 = vunpack.c.h.b16 %v465
        %v503 = vunpack.c.l.b16 %v466
        %v504 = vunpack.c.h.b16 %v466
        %v505 = vunpack.c.l.b16 %v467
        %v506 = vunpack.c.h.b16 %v467
        %v507 = vunpack.c.l.b16 %v468
        %v508 = vunpack.c.h.b16 %v468
        %v509 = vunpack.c.l.b16 %v469
        %v510 = vunpack.c.h.b16 %v469
        %v511 = vunpack.c.l.b16 %v470
        %v512 = vunpack.c.h.b16 %v470
        %v513 = vunpack.c.l.b16 %v471
        %v514 = vunpack.c.h.b16 %v471
        %v515 = vunpack.c.l.b16 %v472
        %v516 = vunpack.c.h.b16 %v472
        %v517 = vunpack.c.l.b16 %v473
        %v518 = vunpack.c.h.b16 %v473
        %v519 = vunpack.c.l.b16 %v474
        %v520 = vunpack.c.h.b16 %v474
        %v521 = vunpack.c.l.b16 %v475
        %v522 = vunpack.c.h.b16 %v475
        %v523 = vunpack.c.l.b16 %v476
        %v524 = vunpack.c.h.b16 %v476
        %v525 = vpack.c.b16 %v495, %v493
        %v526 = vpack.c.b16 %v496, %v494
        %v527 = vpack.c.b16 %v499, %v497
        %v528 = vpack.c.b16 %v500, %v498
        %v529 = vpack.c.b16 %v503, %v501
        %v530 = vpack.c.b16 %v504, %v502
        %v531 = vpack.c.b16 %v507, %v505
        %v532 = vpack.c.b16 %v508, %v506
        %v533 = vpack.c.b16 %v511, %v509
        %v534 = vpack.c.b16 %v512, %v510
        %v535 = vpack.c.b16 %v515, %v513
        %v536 = vpack.c.b16 %v516, %v514
        %v537 = vpack.c.b16 %v519, %v517
        %v538 = vpack.c.b16 %v520, %v518
        %v539 = vpack.c.b16 %v523, %v521
        %v540 = vpack.c.b16 %v524, %v522
        %557 = vmatprep.subr.bf16.mxu0 %v526
        %558 = vmatpush1.bf16.msra.mxu0 %v525
        %559 = vmatprep.subr.bf16.mxu0 %v528
        %560 = vmatpush1.bf16.msra.mxu0 %v527
        %561 = vmatprep.subr.bf16.mxu0 %v530
        %562 = vmatpush1.bf16.msra.mxu0 %v529
        %563 = vmatprep.subr.bf16.mxu0 %v532
        %564 = vmatpush1.bf16.msra.mxu0 %v531
        %565 = vmatprep.subr.bf16.mxu0 %v534
        %566 = vmatpush1.bf16.msra.mxu0 %v533
        %567 = vmatprep.subr.bf16.mxu0 %v536
        %568 = vmatpush1.bf16.msra.mxu0 %v535
        %569 = vmatprep.subr.bf16.mxu0 %v538
        %570 = vmatpush1.bf16.msra.mxu0 %v537
        %571 = vmatprep.subr.bf16.mxu0 %v540
        %572 = vmatpush1.bf16.msra.mxu0 %v539
        %573 = vmatprep.subr.bf16.mxu0 0
        %574 = vmatpush1.bf16.msra.mxu0 0
        %575 = vmatprep.subr.bf16.mxu0 0
        %576 = vmatpush1.bf16.msra.mxu0 0
        %577 = vmatprep.subr.bf16.mxu0 0
        %578 = vmatpush1.bf16.msra.mxu0 0
        %579 = vmatprep.subr.bf16.mxu0 0
        %580 = vmatpush1.bf16.msra.mxu0 0
        %581 = vmatprep.subr.bf16.mxu0 0
        %582 = vmatpush1.bf16.msra.mxu0 0
        %583 = vmatprep.subr.bf16.mxu0 0
        %584 = vmatpush1.bf16.msra.mxu0 0
        %585 = vmatprep.subr.bf16.mxu0 0
        %586 = vmatpush1.bf16.msra.mxu0 0
        %587 = vmatprep.subr.bf16.mxu0 0
        %588 = vmatpush1.bf16.msra.mxu0 0
        %589 = vmatprep.mubr.bf16.mxu0 0
        %590 = vmatmul.mubr.bf16.gmra.mrb[0].mxu0 %v457
        %v591 = vpop.f32.mrb[0].mxu0
        %v592 = vadd.f32 0.0, %v591
        %v593 = vpop.f32.mrb[0].mxu0
        %v594 = vadd.f32 0.0, %v593
        %v595 = vpop.f32.mrb[0].mxu0
        %v596 = vadd.f32 0.0, %v595
        %v597 = vpop.f32.mrb[0].mxu0
        %v598 = vadd.f32 0.0, %v597
        %599 = vmatprep.mubr.bf16.mxu0 0
        %600 = vmatmul.mubr.bf16.gmra.mrb[0].mxu0 %v458
        %v601 = vpop.f32.mrb[0].mxu0
        %v602 = vadd.f32 0.0, %v601
        %v603 = vpop.f32.mrb[0].mxu0
        %v604 = vadd.f32 0.0, %v603
        %v605 = vpop.f32.mrb[0].mxu0
        %v606 = vadd.f32 0.0, %v605
        %v607 = vpop.f32.mrb[0].mxu0
        %v608 = vadd.f32 0.0, %v607
        %609 = vmatprep.mubr.bf16.mxu0 0
        %610 = vmatmul.mubr.bf16.gmra.mrb[0].mxu0 %v459
        %v611 = vpop.f32.mrb[0].mxu0
        %v612 = vadd.f32 0.0, %v611
        %v613 = vpop.f32.mrb[0].mxu0
        %v614 = vadd.f32 0.0, %v613
        %v615 = vpop.f32.mrb[0].mxu0
        %v616 = vadd.f32 0.0, %v615
        %v617 = vpop.f32.mrb[0].mxu0
        %v618 = vadd.f32 0.0, %v617
        %619 = vmatprep.mubr.bf16.mxu0 0
        %620 = vmatmul.mubr.bf16.gmra.mrb[0].mxu0 %v460
        %v621 = vpop.f32.mrb[0].mxu0
        %v622 = vadd.f32 0.0, %v621
        %v623 = vpop.f32.mrb[0].mxu0
        %v624 = vadd.f32 0.0, %v623
        %v625 = vpop.f32.mrb[0].mxu0
        %v626 = vadd.f32 0.0, %v625
        %v627 = vpop.f32.mrb[0].mxu0
        %v628 = vadd.f32 0.0, %v627
        %629 = vdwg.mxu0
        %v630 = vld [vmem:[%s4] sm:$0x1]
        %v632 = vlaneseq
        %v633 = vshrl.u32 %v632, 7
        %v634 = vsub.s32 0, %v633
        %v635 = vrot.slane %v630, %v634
        %v637 = vadd.f32 %v594, %v635
        %v638 = vadd.f32 %v598, %v635
        %v639 = vadd.f32 %v604, %v635
        %v640 = vadd.f32 %v608, %v635
        %v641 = vadd.f32 %v614, %v635
        %v642 = vadd.f32 %v618, %v635
        %v643 = vadd.f32 %v624, %v635
        %v644 = vadd.f32 %v628, %v635
        %v645 = vmax.f32 %v637, 0.0
        %v646 = vmax.f32 %v638, 0.0
        %v647 = vmax.f32 %v639, 0.0
        %v648 = vmax.f32 %v640, 0.0
        %v649 = vmax.f32 %v641, 0.0
        %v650 = vmax.f32 %v642, 0.0
        %v651 = vmax.f32 %v643, 0.0
        %v652 = vmax.f32 %v644, 0.0
        %v653 = vpack.c.bf16 %v646, %v645
        %v654 = vpack.c.bf16 %v648, %v647
        %v655 = vpack.c.bf16 %v650, %v649
        %v656 = vpack.c.bf16 %v652, %v651
        %v657 = vld [vmem:[%s5] sm:$0xf]
        %v658 = vld [vmem:[%s5 + $0x4] sm:$0xf]
        %v659 = vld [vmem:[%s5 + $0x8] sm:$0xf]
        %v660 = vld [vmem:[%s5 + $0xc] sm:$0xf]
        %v661 = vld [vmem:[%s5 + $0x10] sm:$0xf]
        %v662 = vld [vmem:[%s5 + $0x14] sm:$0xf]
        %v663 = vld [vmem:[%s5 + $0x18] sm:$0xf]
        %v664 = vld [vmem:[%s5 + $0x1c] sm:$0xf]
        %v665 = vld [vmem:[%s5 + $0x20] sm:$0xf]
        %v666 = vld [vmem:[%s5 + $0x24] sm:$0xf]
        %v667 = vld [vmem:[%s5 + $0x28] sm:$0xf]
        %v668 = vld [vmem:[%s5 + $0x2c] sm:$0xf]
        %v669 = vld [vmem:[%s5 + $0x30] sm:$0xf]
        %v670 = vld [vmem:[%s5 + $0x34] sm:$0xf]
        %v671 = vld [vmem:[%s5 + $0x38] sm:$0xf]
        %v672 = vld [vmem:[%s5 + $0x3c] sm:$0xf]
        %v689 = vunpack.c.l.b16 %v657
        %v690 = vunpack.c.l.b16 %v658
        %v691 = vunpack.c.l.b16 %v659
        %v692 = vunpack.c.l.b16 %v660
        %v693 = vunpack.c.l.b16 %v661
        %v694 = vunpack.c.l.b16 %v662
        %v695 = vunpack.c.l.b16 %v663
        %v696 = vunpack.c.l.b16 %v664
        %v697 = vunpack.c.l.b16 %v665
        %v698 = vunpack.c.l.b16 %v666
        %v699 = vunpack.c.l.b16 %v667
        %v700 = vunpack.c.l.b16 %v668
        %v701 = vunpack.c.l.b16 %v669
        %v702 = vunpack.c.l.b16 %v670
        %v703 = vunpack.c.l.b16 %v671
        %v704 = vunpack.c.l.b16 %v672
        %v705 = vpack.c.b16 %v690, %v689
        %v706 = vpack.c.b16 %v692, %v691
        %v707 = vpack.c.b16 %v694, %v693
        %v708 = vpack.c.b16 %v696, %v695
        %v709 = vpack.c.b16 %v698, %v697
        %v710 = vpack.c.b16 %v700, %v699
        %v711 = vpack.c.b16 %v702, %v701
        %v712 = vpack.c.b16 %v704, %v703
        %721 = vmatprep.subr.bf16.mxu0 0
        %722 = vmatpush1.bf16.msra.mxu0 %v705
        %723 = vmatprep.subr.bf16.mxu0 0
        %724 = vmatpush1.bf16.msra.mxu0 %v706
        %725 = vmatprep.subr.bf16.mxu0 0
        %726 = vmatpush1.bf16.msra.mxu0 %v707
        %727 = vmatprep.subr.bf16.mxu0 0
        %728 = vmatpush1.bf16.msra.mxu0 %v708
        %729 = vmatprep.subr.bf16.mxu0 0
        %730 = vmatpush1.bf16.msra.mxu0 %v709
        %731 = vmatprep.subr.bf16.mxu0 0
        %732 = vmatpush1.bf16.msra.mxu0 %v710
        %733 = vmatprep.subr.bf16.mxu0 0
        %734 = vmatpush1.bf16.msra.mxu0 %v711
        %735 = vmatprep.subr.bf16.mxu0 0
        %736 = vmatpush1.bf16.msra.mxu0 %v712
        %737 = vmatprep.subr.bf16.mxu0 0
        %738 = vmatpush1.bf16.msra.mxu0 0
        %739 = vmatprep.subr.bf16.mxu0 0
        %740 = vmatpush1.bf16.msra.mxu0 0
        %741 = vmatprep.subr.bf16.mxu0 0
        %742 = vmatpush1.bf16.msra.mxu0 0
        %743 = vmatprep.subr.bf16.mxu0 0
        %744 = vmatpush1.bf16.msra.mxu0 0
        %745 = vmatprep.subr.bf16.mxu0 0
        %746 = vmatpush1.bf16.msra.mxu0 0
        %747 = vmatprep.subr.bf16.mxu0 0
        %748 = vmatpush1.bf16.msra.mxu0 0
        %749 = vmatprep.subr.bf16.mxu0 0
        %750 = vmatpush1.bf16.msra.mxu0 0
        %751 = vmatprep.subr.bf16.mxu0 0
        %752 = vmatpush1.bf16.msra.mxu0 0
        %753 = vmatprep.mubr.bf16.mxu0 0
        %754 = vmatmul.mubr.bf16.gmra.mrb[0].mxu0 %v653
        %v755 = vpop.f32.mrb[0].mxu0
        %v756 = vadd.f32 0.0, %v755
        %v757 = vpop.f32.mrb[0].mxu0
        %v758 = vpop.f32.mrb[0].mxu0
        %v759 = vadd.f32 0.0, %v758
        %v760 = vpop.f32.mrb[0].mxu0
        %761 = vmatprep.mubr.bf16.mxu0 0
        %762 = vmatmul.mubr.bf16.gmra.mrb[0].mxu0 %v654
        %v763 = vpop.f32.mrb[0].mxu0
        %v764 = vadd.f32 0.0, %v763
        %v765 = vpop.f32.mrb[0].mxu0
        %v766 = vpop.f32.mrb[0].mxu0
        %v767 = vadd.f32 0.0, %v766
        %v768 = vpop.f32.mrb[0].mxu0
        %769 = vmatprep.mubr.bf16.mxu0 0
        %770 = vmatmul.mubr.bf16.gmra.mrb[0].mxu0 %v655
        %v771 = vpop.f32.mrb[0].mxu0
        %v772 = vadd.f32 0.0, %v771
        %v773 = vpop.f32.mrb[0].mxu0
        %v774 = vpop.f32.mrb[0].mxu0
        %v775 = vadd.f32 0.0, %v774
        %v776 = vpop.f32.mrb[0].mxu0
        %777 = vmatprep.mubr.bf16.mxu0 0
        %778 = vmatmul.mubr.bf16.gmra.mrb[0].mxu0 %v656
        %v779 = vpop.f32.mrb[0].mxu0
        %v780 = vadd.f32 0.0, %v779
        %v781 = vpop.f32.mrb[0].mxu0
        %v782 = vpop.f32.mrb[0].mxu0
        %v783 = vadd.f32 0.0, %v782
        %v784 = vpop.f32.mrb[0].mxu0
        %785 = vdwg.mxu0
        %v786 = vadd.f32 %v592, %v756
        %v787 = vadd.f32 %v596, %v759
        %v788 = vadd.f32 %v602, %v764
        %v789 = vadd.f32 %v606, %v767
        %v790 = vadd.f32 %v612, %v772
        %v791 = vadd.f32 %v616, %v775
        %v792 = vadd.f32 %v622, %v780
        %v793 = vadd.f32 %v626, %v783
        %v794 = vld [vmem:[%s6] sm:$0x1]
        %v796 = vlaneseq
        %v797 = vshrl.u32 %v796, 7
        %v798 = vsub.s32 0, %v797
        %v799 = vrot.slane %v794, %v798
        %v801 = vadd.f32 %v786, %v799
        %v802 = vadd.f32 %v787, %v799
        %v803 = vadd.f32 %v788, %v799
        %v804 = vadd.f32 %v789, %v799
        %v805 = vadd.f32 %v790, %v799
        %v806 = vadd.f32 %v791, %v799
        %v807 = vadd.f32 %v792, %v799
        %v808 = vadd.f32 %v793, %v799
        %809 = vst [vmem:[%s272] sm:$0xff] %v801
        %810 = vst [vmem:[%s272 + $0x8] sm:$0xff] %v802
        %811 = vst [vmem:[%s272 + $0x10] sm:$0xff] %v803
        %812 = vst [vmem:[%s272 + $0x18] sm:$0xff] %v804
        %813 = vst [vmem:[%s272 + $0x20] sm:$0xff] %v805
        %814 = vst [vmem:[%s272 + $0x28] sm:$0xff] %v806
        %815 = vst [vmem:[%s272 + $0x30] sm:$0xff] %v807
        %816 = vst [vmem:[%s272 + $0x38] sm:$0xff] %v808
        %s817 = sand.u32 %s181, 1
        %s818 = scalar_lea.sflag [#allocation3], %s817
        %s819 = sand.u32 %s181, 1
        %s820 = smul.addr %s819, 64
        %s821 = scalar_lea.vmem [#allocation2], %s820
        // Predicated region
        $region49: #{encoder_image_full_forward.1} parent=47 // pred_check
          %p822 = pneg %p191
        $region50: #{encoder_image_full_forward.1} parent=47 // pred_check_branch
          %824 = sbr.rel (%p822) target = $region52
        $region51: #{encoder_image_full_forward.1} parent=47 // pred_region
          %s825 = smul.u32 8, %s21
          %s827 = ssub.s32 1024, 1024
          %828 = vsyncadd %s818, %s827
          %s829 = smul.addr %s825, 128
          %s830 = scalar_lea.hbm %s7, %s829
          %s831 = sshll.u32 %s821, 4
          %s832 = int_to_ptr.vmem [resolvable:$true] %s831
          %837 = dma.vmem_to_hbm [thread:$0]  %s832, 1024, %s830, %s818, 128, 128, 8
        $region52: #{encoder_image_full_forward.1} parent=47 // pred_fallthru
          _
      $region48: #{encoder_image_full_forward.1} parent=5 // pred_fallthru
        _
      %p838 = scmp.le.s32.totalorder 2, %s16
      // Predicated region
      $region53: #{encoder_image_full_forward.1} parent=5 // pred_check
        %p839 = pneg %p838
      $region54: #{encoder_image_full_forward.1} parent=5 // pred_check_branch
        %841 = sbr.rel (%p839) target = $region56
      $region55: #{encoder_image_full_forward.1} parent=5 // pred_region
        %s842 = ssub.s32 %s16, 2
        // Predicated region
        $region57: #{encoder_image_full_forward.1} parent=55 // pred_check
          %p843 = pneg %p197
        $region58: #{encoder_image_full_forward.1} parent=55 // pred_check_branch
          %845 = sbr.rel (%p843) target = $region60
        $region59: #{encoder_image_full_forward.1} parent=55 // pred_region
          %s846 = sand.u32 %s182, 1
          %s847 = scalar_lea.sflag [#allocation3], %s846
          %s848 = sand.u32 %s182, 1
          %s849 = smul.addr %s848, 64
          %s850 = scalar_lea.vmem [#allocation2], %s849
          %851 = dma.done %s847, 1024
        $region60: #{encoder_image_full_forward.1} parent=55 // pred_fallthru
          _
      $region56: #{encoder_image_full_forward.1} parent=5 // pred_fallthru
        _
    $region6: #{encoder_image_full_forward.1} parent=1 // loop_footer
      %s20 = sadd.s32 1, %s16
    $region7: #{encoder_image_full_forward.1} parent=1 // loop_footer_branch
      %15 = sbr.rel target = $region3
    $region8: #{encoder_image_full_forward.1} parent=1 // loop_exit
      _
    %852 = vsyncpa [#allocation3], 1
    %s853 = scalar_lea.sflag [#allocation3], 1
    %854 = vsyncpa %s853, 1

// kernel: encoder_image_full_forward.1
$region0: #{encoder_image_full_forward.1}
  #allocation0 [shape = 'u32[]', space=smem, size = 0x4, offset = 0x4, fixed_abs, tag = 'smem constant byte address 0x4 - core index']
  #allocation1 [shape = 'u32[144,128]{1,0:T(1,128)}', space=vmem, size = 0x12000, scoped, tag = 'internal scratch']
  %s0 = inlined_call_operand.vmem [shape: bf16[128,128], index: 0, kind: input, shape index: {}]
  %s1 = inlined_call_operand.vmem [shape: bf16[128,128], index: 1, kind: input, shape index: {}]
  %s2 = inlined_call_operand.vmem [shape: f32[1,128], index: 2, kind: input, shape index: {}]
  %s3 = inlined_call_operand.vmem [shape: bf16[128,256], index: 3, kind: input, shape index: {}]
  %s4 = inlined_call_operand.vmem [shape: f32[1,128], index: 4, kind: input, shape index: {}]
  %s5 = inlined_call_operand.vmem [shape: bf16[128,128], index: 5, kind: input, shape index: {}]
  %s6 = inlined_call_operand.vmem [shape: f32[1,128], index: 6, kind: input, shape index: {}]
  %s7 = inlined_call_operand.hbm [shape: f32[128,128], index: 7, kind: output, shape index: {}]
  %s8 = sld [smem:[#allocation0]]
  $region61: #{encoder_image_full_forward.1} parent=0
    _
  %s10 = ssub.s32 1, %s8
  %s11 = scalar_select 0, %s10, %s8
  $region1: #{encoder_image_full_forward.1} parent=0
    #allocation2 [shape = 'u8[65536]{0}', space=vmem, size = 0x10000, scoped, tag = 'output window, operand 0']
    #allocation3 [shape = 's32[2]{0}', space=sflag, size = 0x8, scoped, tag = 'scoped memory for encoder_image_full_forward.1']
    %12 = vsyncpa [#allocation3], 0
    %s13 = scalar_lea.sflag [#allocation3], 1
    %14 = vsyncpa %s13, 0
    loop: start=0, step=1, limit=4
    $region2: #{encoder_image_full_forward.1} parent=1 // loop_pre_header
      _
    $region3: #{encoder_image_full_forward.1} parent=1 // loop_header
      %s16 = sphi 0, %s20
      %p17 = scmp.ge.s32.totalorder %s16, 4
      %s26 = sphi 0, %s28
      %s29 = sphi 0, %s26
      %s30 = sphi 0, %s29
      %s46 = sphi 0, %s30
      %s50 = sphi 0, %s50
      %s52 = sphi 0, %s50
      %s53 = sphi 0, %s52
      %s67 = sphi 0, %s53
      %s71 = sphi 0, %s71
      %s73 = sphi 0, %s71
      %s74 = sphi 0, %s73
      %s88 = sphi 0, %s74
      %s92 = sphi 0, %s92
      %s94 = sphi 0, %s92
      %s95 = sphi 0, %s94
      %s109 = sphi 0, %s95
      %s113 = sphi 0, %s113
      %s115 = sphi 0, %s113
      %s116 = sphi 0, %s115
      %s130 = sphi 0, %s116
      %s134 = sphi 0, %s134
      %s136 = sphi 0, %s134
      %s137 = sphi 0, %s136
      %s151 = sphi 0, %s137
      %s155 = sphi 0, %s155
      %s157 = sphi 0, %s155
      %s158 = sphi 0, %s157
      %s172 = sphi 0, %s158
      %s178 = sphi 0, %s180
      %s181 = sphi 0, %s178
      %s182 = sphi 0, %s181
      %s198 = sphi 0, %s182
    $region4: #{encoder_image_full_forward.1} parent=1 // loop_header_branch
      %19 = sbr.rel (%p17) target = $region8
    $region5: #{encoder_image_full_forward.1} parent=1 // loop_body
      %s21 = ssub.s32 %s16, 1
      %s22 = ssub.s32 %s16, 2
      %s23 = sadd.s32 %s16, 1
      %s24 = ssub.s32 %s16, %s23
      %p25 = scmp.eq.s32.totalorder %s24, 0
      %s27 = sadd.s32 %s26, 1
      %s28 = scalar_select %p25, %s26, %s27
      %p31 = pneg %p25
      %p32 = scmp.eq.s32.totalorder %s16, 1
      %p33 = por %p31, %p32
      %p34 = scmp.ne.s32.totalorder %s26, %s29
      %p35 = scmp.eq.s32.totalorder %s16, 0
      %p36 = por %p34, %p35
      %p37 = scmp.ne.s32.totalorder %s26, %s29
      %p38 = scmp.eq.s32.totalorder %s21, 1
      %p39 = por %p37, %p38
      %p40 = scmp.ne.s32.totalorder %s29, %s30
      %p41 = scmp.eq.s32.totalorder %s21, 0
      %p42 = por %p40, %p41
      %p43 = scmp.ne.s32.totalorder %s29, %s30
      %p44 = scmp.eq.s32.totalorder %s22, 1
      %p45 = por %p43, %p44
      %p47 = scmp.ne.s32.totalorder %s30, %s46
      %p48 = scmp.eq.s32.totalorder %s22, 0
      %p49 = por %p47, %p48
      %s51 = sadd.s32 %s50, 1
      %p54 = scmp.eq.s32.totalorder %s16, 1
      %p55 = scmp.ne.s32.totalorder %s50, %s52
      %p56 = scmp.eq.s32.totalorder %s16, 0
      %p57 = por %p55, %p56
      %p58 = scmp.ne.s32.totalorder %s50, %s52
      %p59 = scmp.eq.s32.totalorder %s21, 1
      %p60 = por %p58, %p59
      %p61 = scmp.ne.s32.totalorder %s52, %s53
      %p62 = scmp.eq.s32.totalorder %s21, 0
      %p63 = por %p61, %p62
      %p64 = scmp.ne.s32.totalorder %s52, %s53
      %p65 = scmp.eq.s32.totalorder %s22, 1
      %p66 = por %p64, %p65
      %p68 = scmp.ne.s32.totalorder %s53, %s67
      %p69 = scmp.eq.s32.totalorder %s22, 0
      %p70 = por %p68, %p69
      %s72 = sadd.s32 %s71, 1
      %p75 = scmp.eq.s32.totalorder %s16, 1
      %p76 = scmp.ne.s32.totalorder %s71, %s73
      %p77 = scmp.eq.s32.totalorder %s16, 0
      %p78 = por %p76, %p77
      %p79 = scmp.ne.s32.totalorder %s71, %s73
      %p80 = scmp.eq.s32.totalorder %s21, 1
      %p81 = por %p79, %p80
      %p82 = scmp.ne.s32.totalorder %s73, %s74
      %p83 = scmp.eq.s32.totalorder %s21, 0
      %p84 = por %p82, %p83
      %p85 = scmp.ne.s32.totalorder %s73, %s74
      %p86 = scmp.eq.s32.totalorder %s22, 1
      %p87 = por %p85, %p86
      %p89 = scmp.ne.s32.totalorder %s74, %s88
      %p90 = scmp.eq.s32.totalorder %s22, 0
      %p91 = por %p89, %p90
      %s93 = sadd.s32 %s92, 1
      %p96 = scmp.eq.s32.totalorder %s16, 1
      %p97 = scmp.ne.s32.totalorder %s92, %s94
      %p98 = scmp.eq.s32.totalorder %s16, 0
      %p99 = por %p97, %p98
      %p100 = scmp.ne.s32.totalorder %s92, %s94
      %p101 = scmp.eq.s32.totalorder %s21, 1
      %p102 = por %p100, %p101
      %p103 = scmp.ne.s32.totalorder %s94, %s95
      %p104 = scmp.eq.s32.totalorder %s21, 0
      %p105 = por %p103, %p104
      %p106 = scmp.ne.s32.totalorder %s94, %s95
      %p107 = scmp.eq.s32.totalorder %s22, 1
      %p108 = por %p106, %p107
      %p110 = scmp.ne.s32.totalorder %s95, %s109
      %p111 = scmp.eq.s32.totalorder %s22, 0
      %p112 = por %p110, %p111
      %s114 = sadd.s32 %s113, 1
      %p117 = scmp.eq.s32.totalorder %s16, 1
      %p118 = scmp.ne.s32.totalorder %s113, %s115
      %p119 = scmp.eq.s32.totalorder %s16, 0
      %p120 = por %p118, %p119
      %p121 = scmp.ne.s32.totalorder %s113, %s115
      %p122 = scmp.eq.s32.totalorder %s21, 1
      %p123 = por %p121, %p122
      %p124 = scmp.ne.s32.totalorder %s115, %s116
      %p125 = scmp.eq.s32.totalorder %s21, 0
      %p126 = por %p124, %p125
      %p127 = scmp.ne.s32.totalorder %s115, %s116
      %p128 = scmp.eq.s32.totalorder %s22, 1
      %p129 = por %p127, %p128
      %p131 = scmp.ne.s32.totalorder %s116, %s130
      %p132 = scmp.eq.s32.totalorder %s22, 0
      %p133 = por %p131, %p132
      %s135 = sadd.s32 %s134, 1
      %p138 = scmp.eq.s32.totalorder %s16, 1
      %p139 = scmp.ne.s32.totalorder %s134, %s136
      %p140 = scmp.eq.s32.totalorder %s16, 0
      %p141 = por %p139, %p140
      %p142 = scmp.ne.s32.totalorder %s134, %s136
      %p143 = scmp.eq.s32.totalorder %s21, 1
      %p144 = por %p142, %p143
      %p145 = scmp.ne.s32.totalorder %s136, %s137
      %p146 = scmp.eq.s32.totalorder %s21, 0
      %p147 = por %p145, %p146
      %p148 = scmp.ne.s32.totalorder %s136, %s137
      %p149 = scmp.eq.s32.totalorder %s22, 1
      %p150 = por %p148, %p149
      %p152 = scmp.ne.s32.totalorder %s137, %s151
      %p153 = scmp.eq.s32.totalorder %s22, 0
      %p154 = por %p152, %p153
      %s156 = sadd.s32 %s155, 1
      %p159 = scmp.eq.s32.totalorder %s16, 1
      %p160 = scmp.ne.s32.totalorder %s155, %s157
      %p161 = scmp.eq.s32.totalorder %s16, 0
      %p162 = por %p160, %p161
      %p163 = scmp.ne.s32.totalorder %s155, %s157
      %p164 = scmp.eq.s32.totalorder %s21, 1
      %p165 = por %p163, %p164
      %p166 = scmp.ne.s32.totalorder %s157, %s158
      %p167 = scmp.eq.s32.totalorder %s21, 0
      %p168 = por %p166, %p167
      %p169 = scmp.ne.s32.totalorder %s157, %s158
      %p170 = scmp.eq.s32.totalorder %s22, 1
      %p171 = por %p169, %p170
      %p173 = scmp.ne.s32.totalorder %s158, %s172
      %p174 = scmp.eq.s32.totalorder %s22, 0
      %p175 = por %p173, %p174
      %s176 = ssub.s32 %s16, %s23
      %p177 = scmp.eq.s32.totalorder %s176, 0
      %s179 = sadd.s32 %s178, 1
      %s180 = scalar_select %p177, %s178, %s179
      %p183 = pneg %p177
      %p184 = scmp.eq.s32.totalorder %s16, 1
      %p185 = por %p183, %p184
      %p186 = scmp.ne.s32.totalorder %s178, %s181
      %p187 = scmp.eq.s32.totalorder %s16, 0
      %p188 = por %p186, %p187
      %p189 = scmp.ne.s32.totalorder %s178, %s181
      %p190 = scmp.eq.s32.totalorder %s21, 1
      %p191 = por %p189, %p190
      %p192 = scmp.ne.s32.totalorder %s181, %s182
      %p193 = scmp.eq.s32.totalorder %s21, 0
      %p194 = por %p192, %p193
      %p195 = scmp.ne.s32.totalorder %s181, %s182
      %p196 = scmp.eq.s32.totalorder %s22, 1
      %p197 = por %p195, %p196
      %p199 = scmp.ne.s32.totalorder %s182, %s198
      %p200 = scmp.eq.s32.totalorder %s22, 0
      %p201 = por %p199, %p200
      %p202 = scmp.le.s32.totalorder 1, %s16
      %p203 = scmp.lt.s32.totalorder %s16, 3
      %p204 = pnand %p202, %p203
      %p205 = pneg %p204
      // Predicated region
      $region9: #{encoder_image_full_forward.1} parent=5 // pred_check
        _
      $region10: #{encoder_image_full_forward.1} parent=5 // pred_check_branch
        %207 = sbr.rel (%p204) target = $region12
      $region11: #{encoder_image_full_forward.1} parent=5 // pred_region
        %s208 = ssub.s32 %s16, 1
        // Predicated region
        $region13: #{encoder_image_full_forward.1} parent=11 // pred_check
          %p209 = pneg %p63
        $region14: #{encoder_image_full_forward.1} parent=11 // pred_check_branch
          %211 = sbr.rel (%p209) target = $region16
        $region15: #{encoder_image_full_forward.1} parent=11 // pred_region
          _
        $region16: #{encoder_image_full_forward.1} parent=11 // pred_fallthru
          _
        // Predicated region
        $region17: #{encoder_image_full_forward.1} parent=11 // pred_check
          %p212 = pneg %p84
        $region18: #{encoder_image_full_forward.1} parent=11 // pred_check_branch
          %214 = sbr.rel (%p212) target = $region20
        $region19: #{encoder_image_full_forward.1} parent=11 // pred_region
          _
        $region20: #{encoder_image_full_forward.1} parent=11 // pred_fallthru
          _
        // Predicated region
        $region21: #{encoder_image_full_forward.1} parent=11 // pred_check
          %p215 = pneg %p105
        $region22: #{encoder_image_full_forward.1} parent=11 // pred_check_branch
          %217 = sbr.rel (%p215) target = $region24
        $region23: #{encoder_image_full_forward.1} parent=11 // pred_region
          _
        $region24: #{encoder_image_full_forward.1} parent=11 // pred_fallthru
          _
        // Predicated region
        $region25: #{encoder_image_full_forward.1} parent=11 // pred_check
          %p218 = pneg %p126
        $region26: #{encoder_image_full_forward.1} parent=11 // pred_check_branch
          %220 = sbr.rel (%p218) target = $region28
        $region27: #{encoder_image_full_forward.1} parent=11 // pred_region
          _
        $region28: #{encoder_image_full_forward.1} parent=11 // pred_fallthru
          _
        // Predicated region
        $region29: #{encoder_image_full_forward.1} parent=11 // pred_check
          %p221 = pneg %p147
        $region30: #{encoder_image_full_forward.1} parent=11 // pred_check_branch
          %223 = sbr.rel (%p221) target = $region32
        $region31: #{encoder_image_full_forward.1} parent=11 // pred_region
          _
        $region32: #{encoder_image_full_forward.1} parent=11 // pred_fallthru
          _
        // Predicated region
        $region33: #{encoder_image_full_forward.1} parent=11 // pred_check
          %p224 = pneg %p168
        $region34: #{encoder_image_full_forward.1} parent=11 // pred_check_branch
          %226 = sbr.rel (%p224) target = $region36
        $region35: #{encoder_image_full_forward.1} parent=11 // pred_region
          _
        $region36: #{encoder_image_full_forward.1} parent=11 // pred_fallthru
          _
      $region12: #{encoder_image_full_forward.1} parent=5 // pred_fallthru
        _
      %p227 = scmp.lt.s32.totalorder %s16, 2
      // Predicated region
      $region37: #{encoder_image_full_forward.1} parent=5 // pred_check
        %p228 = pneg %p227
      $region38: #{encoder_image_full_forward.1} parent=5 // pred_check_branch
        %230 = sbr.rel (%p228) target = $region40
      $region39: #{encoder_image_full_forward.1} parent=5 // pred_region
        // Predicated region
        $region41: #{encoder_image_full_forward.1} parent=39 // pred_check
          %p231 = pneg %p36
        $region42: #{encoder_image_full_forward.1} parent=39 // pred_check_branch
          %233 = sbr.rel (%p231) target = $region44
        $region43: #{encoder_image_full_forward.1} parent=39 // pred_region
          %s234 = smul.u32 8, %s16
          %p235 = scmp.lt.s32.totalorder %s234, 15
          %s236 = scalar_select %p235, %s234, 15
          %s237 = smul.addr %s236, 4
          %s238 = scalar_lea.vmem %s0, %s237
          %s239 = smul.u32 8, %s16
        $region44: #{encoder_image_full_forward.1} parent=39 // pred_fallthru
          _
      $region40: #{encoder_image_full_forward.1} parent=5 // pred_fallthru
        _
      %p240 = scmp.le.s32.totalorder 1, %s16
      %p241 = scmp.lt.s32.totalorder %s16, 3
      %p242 = pnand %p240, %p241
      %p243 = pneg %p242
      // Predicated region
      $region45: #{encoder_image_full_forward.1} parent=5 // pred_check
        _
      $region46: #{encoder_image_full_forward.1} parent=5 // pred_check_branch
        %245 = sbr.rel (%p242) target = $region48
      $region47: #{encoder_image_full_forward.1} parent=5 // pred_region
        %s246 = ssub.s32 %s16, 1
        %s247 = smul.u32 8, %s21
        %p248 = scmp.lt.s32.totalorder %s247, 15
        %s249 = scalar_select %p248, %s247, 15
        %s250 = smul.addr %s249, 4
        %s251 = scalar_lea.vmem %s0, %s250
        %p252 = pneg %p42
        %p253 = pneg %p39
        %p254 = pneg %p63
        %p255 = pneg %p60
        %p256 = pneg %p84
        %p257 = pneg %p81
        %p258 = pneg %p105
        %p259 = pneg %p102
        %p260 = pneg %p126
        %p261 = pneg %p123
        %p262 = pneg %p147
        %p263 = pneg %p144
        %p264 = pneg %p168
        %p265 = pneg %p165
        %p266 = pneg %p194
        %p267 = pneg %p191
        %s268 = sand.u32 %s181, 1
        %s269 = scalar_lea.sflag [#allocation3], %s268
        %s270 = sand.u32 %s181, 1
        %s271 = smul.addr %s270, 64
        %s272 = scalar_lea.vmem [#allocation2], %s271
        %s273 = smul.u32 8, %s21
        %p274 = scmp.lt.s32.totalorder %s273, 15
        %s275 = scalar_select %p274, %s273, 15
        %s276 = smul.addr %s275, 4
        %s277 = scalar_lea.vmem %s0, %s276
        %s278 = smul.u32 8, %s21
        %s279 = smul.u32 8, %s21
        %v281 = vld [vmem:[%s277] sm:$0xf]
        %v282 = vld [vmem:[%s277 + $0x4] sm:$0xf]
        %v283 = vld [vmem:[%s277 + $0x8] sm:$0xf]
        %v284 = vld [vmem:[%s277 + $0xc] sm:$0xf]
        %v285 = vld [vmem:[%s277 + $0x10] sm:$0xf]
        %v286 = vld [vmem:[%s277 + $0x14] sm:$0xf]
        %v287 = vld [vmem:[%s277 + $0x18] sm:$0xf]
        %v288 = vld [vmem:[%s277 + $0x1c] sm:$0xf]
        %v289 = vld [vmem:[%s1] sm:$0xf]
        %v290 = vld [vmem:[%s1 + $0x4] sm:$0xf]
        %v291 = vld [vmem:[%s1 + $0x8] sm:$0xf]
        %v292 = vld [vmem:[%s1 + $0xc] sm:$0xf]
        %v293 = vld [vmem:[%s1 + $0x10] sm:$0xf]
        %v294 = vld [vmem:[%s1 + $0x14] sm:$0xf]
        %v295 = vld [vmem:[%s1 + $0x18] sm:$0xf]
        %v296 = vld [vmem:[%s1 + $0x1c] sm:$0xf]
        %v297 = vld [vmem:[%s1 + $0x20] sm:$0xf]
        %v298 = vld [vmem:[%s1 + $0x24] sm:$0xf]
        %v299 = vld [vmem:[%s1 + $0x28] sm:$0xf]
        %v300 = vld [vmem:[%s1 + $0x2c] sm:$0xf]
        %v301 = vld [vmem:[%s1 + $0x30] sm:$0xf]
        %v302 = vld [vmem:[%s1 + $0x34] sm:$0xf]
        %v303 = vld [vmem:[%s1 + $0x38] sm:$0xf]
        %v304 = vld [vmem:[%s1 + $0x3c] sm:$0xf]
        %v305 = vld [vmem:[%s2] sm:$0x1]
        %v307 = vlaneseq
        %v308 = vshrl.u32 %v307, 7
        %v309 = vsub.s32 0, %v308
        %v310 = vrot.slane %v305, %v309
        %v320 = vunpack.c.l.b16 %v281
        %v321 = vunpack.c.l.b16 %v282
        %v322 = vunpack.c.l.b16 %v283
        %v323 = vunpack.c.l.b16 %v284
        %v324 = vunpack.c.l.b16 %v285
        %v325 = vunpack.c.l.b16 %v286
        %v326 = vunpack.c.l.b16 %v287
        %v327 = vunpack.c.l.b16 %v288
        %v328 = vpack.c.b16 %v321, %v320
        %v329 = vpack.c.b16 %v323, %v322
        %v330 = vpack.c.b16 %v325, %v324
        %v331 = vpack.c.b16 %v327, %v326
        %v352 = vunpack.c.l.b16 %v289
        %v353 = vunpack.c.l.b16 %v290
        %v354 = vunpack.c.l.b16 %v291
        %v355 = vunpack.c.l.b16 %v292
        %v356 = vunpack.c.l.b16 %v293
        %v357 = vunpack.c.l.b16 %v294
        %v358 = vunpack.c.l.b16 %v295
        %v359 = vunpack.c.l.b16 %v296
        %v360 = vunpack.c.l.b16 %v297
        %v361 = vunpack.c.l.b16 %v298
        %v362 = vunpack.c.l.b16 %v299
        %v363 = vunpack.c.l.b16 %v300
        %v364 = vunpack.c.l.b16 %v301
        %v365 = vunpack.c.l.b16 %v302
        %v366 = vunpack.c.l.b16 %v303
        %v367 = vunpack.c.l.b16 %v304
        %v368 = vpack.c.b16 %v353, %v352
        %v369 = vpack.c.b16 %v355, %v354
        %v370 = vpack.c.b16 %v357, %v356
        %v371 = vpack.c.b16 %v359, %v358
        %v372 = vpack.c.b16 %v361, %v360
        %v373 = vpack.c.b16 %v363, %v362
        %v374 = vpack.c.b16 %v365, %v364
        %v375 = vpack.c.b16 %v367, %v366
        %384 = vmatprep.subr.bf16.mxu0 0
        %385 = vmatpush1.bf16.msra.mxu0 %v368
        %386 = vmatprep.subr.bf16.mxu0 0
        %387 = vmatpush1.bf16.msra.mxu0 %v369
        %388 = vmatprep.subr.bf16.mxu0 0
        %389 = vmatpush1.bf16.msra.mxu0 %v370
        %390 = vmatprep.subr.bf16.mxu0 0
        %391 = vmatpush1.bf16.msra.mxu0 %v371
        %392 = vmatprep.subr.bf16.mxu0 0
        %393 = vmatpush1.bf16.msra.mxu0 %v372
        %394 = vmatprep.subr.bf16.mxu0 0
        %395 = vmatpush1.bf16.msra.mxu0 %v373
        %396 = vmatprep.subr.bf16.mxu0 0
        %397 = vmatpush1.bf16.msra.mxu0 %v374
        %398 = vmatprep.subr.bf16.mxu0 0
        %399 = vmatpush1.bf16.msra.mxu0 %v375
        %400 = vmatprep.subr.bf16.mxu0 0
        %401 = vmatpush1.bf16.msra.mxu0 0
        %402 = vmatprep.subr.bf16.mxu0 0
        %403 = vmatpush1.bf16.msra.mxu0 0
        %404 = vmatprep.subr.bf16.mxu0 0
        %405 = vmatpush1.bf16.msra.mxu0 0
        %406 = vmatprep.subr.bf16.mxu0 0
        %407 = vmatpush1.bf16.msra.mxu0 0
        %408 = vmatprep.subr.bf16.mxu0 0
        %409 = vmatpush1.bf16.msra.mxu0 0
        %410 = vmatprep.subr.bf16.mxu0 0
        %411 = vmatpush1.bf16.msra.mxu0 0
        %412 = vmatprep.subr.bf16.mxu0 0
        %413 = vmatpush1.bf16.msra.mxu0 0
        %414 = vmatprep.subr.bf16.mxu0 0
        %415 = vmatpush1.bf16.msra.mxu0 0
        %416 = vmatprep.mubr.bf16.mxu0 0
        %417 = vmatmul.mubr.bf16.gmra.mrb[0].mxu0 %v328
        %v418 = vpop.f32.mrb[0].mxu0
        %v419 = vadd.f32 %v310, %v418
        %v420 = vpop.f32.mrb[0].mxu0
        %v421 = vpop.f32.mrb[0].mxu0
        %v422 = vadd.f32 %v310, %v421
        %v423 = vpop.f32.mrb[0].mxu0
        %424 = vmatprep.mubr.bf16.mxu0 0
        %425 = vmatmul.mubr.bf16.gmra.mrb[0].mxu0 %v329
        %v426 = vpop.f32.mrb[0].mxu0
        %v427 = vadd.f32 %v310, %v426
        %v428 = vpop.f32.mrb[0].mxu0
        %v429 = vpop.f32.mrb[0].mxu0
        %v430 = vadd.f32 %v310, %v429
        %v431 = vpop.f32.mrb[0].mxu0
        %432 = vmatprep.mubr.bf16.mxu0 0
        %433 = vmatmul.mubr.bf16.gmra.mrb[0].mxu0 %v330
        %v434 = vpop.f32.mrb[0].mxu0
        %v435 = vadd.f32 %v310, %v434
        %v436 = vpop.f32.mrb[0].mxu0
        %v437 = vpop.f32.mrb[0].mxu0
        %v438 = vadd.f32 %v310, %v437
        %v439 = vpop.f32.mrb[0].mxu0
        %440 = vmatprep.mubr.bf16.mxu0 0
        %441 = vmatmul.mubr.bf16.gmra.mrb[0].mxu0 %v331
        %v442 = vpop.f32.mrb[0].mxu0
        %v443 = vadd.f32 %v310, %v442
        %v444 = vpop.f32.mrb[0].mxu0
        %v445 = vpop.f32.mrb[0].mxu0
        %v446 = vadd.f32 %v310, %v445
        %v447 = vpop.f32.mrb[0].mxu0
        %448 = vdwg.mxu0
        %v449 = vmax.f32 %v419, 0.0
        %v450 = vmax.f32 %v422, 0.0
        %v451 = vmax.f32 %v427, 0.0
        %v452 = vmax.f32 %v430, 0.0
        %v453 = vmax.f32 %v435, 0.0
        %v454 = vmax.f32 %v438, 0.0
        %v455 = vmax.f32 %v443, 0.0
        %v456 = vmax.f32 %v446, 0.0
        %v457 = vpack.c.bf16 %v450, %v449
        %v458 = vpack.c.bf16 %v452, %v451
        %v459 = vpack.c.bf16 %v454, %v453
        %v460 = vpack.c.bf16 %v456, %v455
        %v461 = vld [vmem:[%s3] sm:$0xff]
        %v462 = vld [vmem:[%s3 + $0x8] sm:$0xff]
        %v463 = vld [vmem:[%s3 + $0x10] sm:$0xff]
        %v464 = vld [vmem:[%s3 + $0x18] sm:$0xff]
        %v465 = vld [vmem:[%s3 + $0x20] sm:$0xff]
        %v466 = vld [vmem:[%s3 + $0x28] sm:$0xff]
        %v467 = vld [vmem:[%s3 + $0x30] sm:$0xff]
        %v468 = vld [vmem:[%s3 + $0x38] sm:$0xff]
        %v469 = vld [vmem:[%s3 + $0x40] sm:$0xff]
        %v470 = vld [vmem:[%s3 + $0x48] sm:$0xff]
        %v471 = vld [vmem:[%s3 + $0x50] sm:$0xff]
        %v472 = vld [vmem:[%s3 + $0x58] sm:$0xff]
        %v473 = vld [vmem:[%s3 + $0x60] sm:$0xff]
        %v474 = vld [vmem:[%s3 + $0x68] sm:$0xff]
        %v475 = vld [vmem:[%s3 + $0x70] sm:$0xff]
        %v476 = vld [vmem:[%s3 + $0x78] sm:$0xff]
        %v493 = vunpack.c.l.b16 %v461
        %v494 = vunpack.c.h.b16 %v461
        %v495 = vunpack.c.l.b16 %v462
        %v496 = vunpack.c.h.b16 %v462
        %v497 = vunpack.c.l.b16 %v463
        %v498 = vunpack.c.h.b16 %v463
        %v499 = vunpack.c.l.b16 %v464
        %v500 = vunpack.c.h.b16 %v464
        %v501 = vunpack.c.l.b16 %v465
        %v502 = vunpack.c.h.b16 %v465
        %v503 = vunpack.c.l.b16 %v466
        %v504 = vunpack.c.h.b16 %v466
        %v505 = vunpack.c.l.b16 %v467
        %v506 = vunpack.c.h.b16 %v467
        %v507 = vunpack.c.l.b16 %v468
        %v508 = vunpack.c.h.b16 %v468
        %v509 = vunpack.c.l.b16 %v469
        %v510 = vunpack.c.h.b16 %v469
        %v511 = vunpack.c.l.b16 %v470
        %v512 = vunpack.c.h.b16 %v470
        %v513 = vunpack.c.l.b16 %v471
        %v514 = vunpack.c.h.b16 %v471
        %v515 = vunpack.c.l.b16 %v472
        %v516 = vunpack.c.h.b16 %v472
        %v517 = vunpack.c.l.b16 %v473
        %v518 = vunpack.c.h.b16 %v473
        %v519 = vunpack.c.l.b16 %v474
        %v520 = vunpack.c.h.b16 %v474
        %v521 = vunpack.c.l.b16 %v475
        %v522 = vunpack.c.h.b16 %v475
        %v523 = vunpack.c.l.b16 %v476
        %v524 = vunpack.c.h.b16 %v476
        %v525 = vpack.c.b16 %v495, %v493
        %v526 = vpack.c.b16 %v496, %v494
        %v527 = vpack.c.b16 %v499, %v497
        %v528 = vpack.c.b16 %v500, %v498
        %v529 = vpack.c.b16 %v503, %v501
        %v530 = vpack.c.b16 %v504, %v502
        %v531 = vpack.c.b16 %v507, %v505
        %v532 = vpack.c.b16 %v508, %v506
        %v533 = vpack.c.b16 %v511, %v509
        %v534 = vpack.c.b16 %v512, %v510
        %v535 = vpack.c.b16 %v515, %v513
        %v536 = vpack.c.b16 %v516, %v514
        %v537 = vpack.c.b16 %v519, %v517
        %v538 = vpack.c.b16 %v520, %v518
        %v539 = vpack.c.b16 %v523, %v521
        %v540 = vpack.c.b16 %v524, %v522
        %557 = vmatprep.subr.bf16.mxu0 %v526
        %558 = vmatpush1.bf16.msra.mxu0 %v525
        %559 = vmatprep.subr.bf16.mxu0 %v528
        %560 = vmatpush1.bf16.msra.mxu0 %v527
        %561 = vmatprep.subr.bf16.mxu0 %v530
        %562 = vmatpush1.bf16.msra.mxu0 %v529
        %563 = vmatprep.subr.bf16.mxu0 %v532
        %564 = vmatpush1.bf16.msra.mxu0 %v531
        %565 = vmatprep.subr.bf16.mxu0 %v534
        %566 = vmatpush1.bf16.msra.mxu0 %v533
        %567 = vmatprep.subr.bf16.mxu0 %v536
        %568 = vmatpush1.bf16.msra.mxu0 %v535
        %569 = vmatprep.subr.bf16.mxu0 %v538
        %570 = vmatpush1.bf16.msra.mxu0 %v537
        %571 = vmatprep.subr.bf16.mxu0 %v540
        %572 = vmatpush1.bf16.msra.mxu0 %v539
        %573 = vmatprep.subr.bf16.mxu0 0
        %574 = vmatpush1.bf16.msra.mxu0 0
        %575 = vmatprep.subr.bf16.mxu0 0
        %576 = vmatpush1.bf16.msra.mxu0 0
        %577 = vmatprep.subr.bf16.mxu0 0
        %578 = vmatpush1.bf16.msra.mxu0 0
        %579 = vmatprep.subr.bf16.mxu0 0
        %580 = vmatpush1.bf16.msra.mxu0 0
        %581 = vmatprep.subr.bf16.mxu0 0
        %582 = vmatpush1.bf16.msra.mxu0 0
        %583 = vmatprep.subr.bf16.mxu0 0
        %584 = vmatpush1.bf16.msra.mxu0 0
        %585 = vmatprep.subr.bf16.mxu0 0
        %586 = vmatpush1.bf16.msra.mxu0 0
        %587 = vmatprep.subr.bf16.mxu0 0
        %588 = vmatpush1.bf16.msra.mxu0 0
        %589 = vmatprep.mubr.bf16.mxu0 0
        %590 = vmatmul.mubr.bf16.gmra.mrb[0].mxu0 %v457
        %v591 = vpop.f32.mrb[0].mxu0
        %v592 = vadd.f32 0.0, %v591
        %v593 = vpop.f32.mrb[0].mxu0
        %v594 = vadd.f32 0.0, %v593
        %v595 = vpop.f32.mrb[0].mxu0
        %v596 = vadd.f32 0.0, %v595
        %v597 = vpop.f32.mrb[0].mxu0
        %v598 = vadd.f32 0.0, %v597
        %599 = vmatprep.mubr.bf16.mxu0 0
        %600 = vmatmul.mubr.bf16.gmra.mrb[0].mxu0 %v458
        %v601 = vpop.f32.mrb[0].mxu0
        %v602 = vadd.f32 0.0, %v601
        %v603 = vpop.f32.mrb[0].mxu0
        %v604 = vadd.f32 0.0, %v603
        %v605 = vpop.f32.mrb[0].mxu0
        %v606 = vadd.f32 0.0, %v605
        %v607 = vpop.f32.mrb[0].mxu0
        %v608 = vadd.f32 0.0, %v607
        %609 = vmatprep.mubr.bf16.mxu0 0
        %610 = vmatmul.mubr.bf16.gmra.mrb[0].mxu0 %v459
        %v611 = vpop.f32.mrb[0].mxu0
        %v612 = vadd.f32 0.0, %v611
        %v613 = vpop.f32.mrb[0].mxu0
        %v614 = vadd.f32 0.0, %v613
        %v615 = vpop.f32.mrb[0].mxu0
        %v616 = vadd.f32 0.0, %v615
        %v617 = vpop.f32.mrb[0].mxu0
        %v618 = vadd.f32 0.0, %v617
        %619 = vmatprep.mubr.bf16.mxu0 0
        %620 = vmatmul.mubr.bf16.gmra.mrb[0].mxu0 %v460
        %v621 = vpop.f32.mrb[0].mxu0
        %v622 = vadd.f32 0.0, %v621
        %v623 = vpop.f32.mrb[0].mxu0
        %v624 = vadd.f32 0.0, %v623
        %v625 = vpop.f32.mrb[0].mxu0
        %v626 = vadd.f32 0.0, %v625
        %v627 = vpop.f32.mrb[0].mxu0
        %v628 = vadd.f32 0.0, %v627
        %629 = vdwg.mxu0
        %v630 = vld [vmem:[%s4] sm:$0x1]
        %v632 = vlaneseq
        %v633 = vshrl.u32 %v632, 7
        %v634 = vsub.s32 0, %v633
        %v635 = vrot.slane %v630, %v634
        %v637 = vadd.f32 %v594, %v635
        %v638 = vadd.f32 %v598, %v635
        %v639 = vadd.f32 %v604, %v635
        %v640 = vadd.f32 %v608, %v635
        %v641 = vadd.f32 %v614, %v635
        %v642 = vadd.f32 %v618, %v635
        %v643 = vadd.f32 %v624, %v635
        %v644 = vadd.f32 %v628, %v635
        %v645 = vmax.f32 %v637, 0.0
        %v646 = vmax.f32 %v638, 0.0
        %v647 = vmax.f32 %v639, 0.0
        %v648 = vmax.f32 %v640, 0.0
        %v649 = vmax.f32 %v641, 0.0
        %v650 = vmax.f32 %v642, 0.0
        %v651 = vmax.f32 %v643, 0.0
        %v652 = vmax.f32 %v644, 0.0
        %v653 = vpack.c.bf16 %v646, %v645
        %v654 = vpack.c.bf16 %v648, %v647
        %v655 = vpack.c.bf16 %v650, %v649
        %v656 = vpack.c.bf16 %v652, %v651
        %v657 = vld [vmem:[%s5] sm:$0xf]
        %v658 = vld [vmem:[%s5 + $0x4] sm:$0xf]
        %v659 = vld [vmem:[%s5 + $0x8] sm:$0xf]
        %v660 = vld [vmem:[%s5 + $0xc] sm:$0xf]
        %v661 = vld [vmem:[%s5 + $0x10] sm:$0xf]
        %v662 = vld [vmem:[%s5 + $0x14] sm:$0xf]
        %v663 = vld [vmem:[%s5 + $0x18] sm:$0xf]
        %v664 = vld [vmem:[%s5 + $0x1c] sm:$0xf]
        %v665 = vld [vmem:[%s5 + $0x20] sm:$0xf]
        %v666 = vld [vmem:[%s5 + $0x24] sm:$0xf]
        %v667 = vld [vmem:[%s5 + $0x28] sm:$0xf]
        %v668 = vld [vmem:[%s5 + $0x2c] sm:$0xf]
        %v669 = vld [vmem:[%s5 + $0x30] sm:$0xf]
        %v670 = vld [vmem:[%s5 + $0x34] sm:$0xf]
        %v671 = vld [vmem:[%s5 + $0x38] sm:$0xf]
        %v672 = vld [vmem:[%s5 + $0x3c] sm:$0xf]
        %v689 = vunpack.c.l.b16 %v657
        %v690 = vunpack.c.l.b16 %v658
        %v691 = vunpack.c.l.b16 %v659
        %v692 = vunpack.c.l.b16 %v660
        %v693 = vunpack.c.l.b16 %v661
        %v694 = vunpack.c.l.b16 %v662
        %v695 = vunpack.c.l.b16 %v663
        %v696 = vunpack.c.l.b16 %v664
        %v697 = vunpack.c.l.b16 %v665
        %v698 = vunpack.c.l.b16 %v666
        %v699 = vunpack.c.l.b16 %v667
        %v700 = vunpack.c.l.b16 %v668
        %v701 = vunpack.c.l.b16 %v669
        %v702 = vunpack.c.l.b16 %v670
        %v703 = vunpack.c.l.b16 %v671
        %v704 = vunpack.c.l.b16 %v672
        %v705 = vpack.c.b16 %v690, %v689
        %v706 = vpack.c.b16 %v692, %v691
        %v707 = vpack.c.b16 %v694, %v693
        %v708 = vpack.c.b16 %v696, %v695
        %v709 = vpack.c.b16 %v698, %v697
        %v710 = vpack.c.b16 %v700, %v699
        %v711 = vpack.c.b16 %v702, %v701
        %v712 = vpack.c.b16 %v704, %v703
        %721 = vmatprep.subr.bf16.mxu0 0
        %722 = vmatpush1.bf16.msra.mxu0 %v705
        %723 = vmatprep.subr.bf16.mxu0 0
        %724 = vmatpush1.bf16.msra.mxu0 %v706
        %725 = vmatprep.subr.bf16.mxu0 0
        %726 = vmatpush1.bf16.msra.mxu0 %v707
        %727 = vmatprep.subr.bf16.mxu0 0
        %728 = vmatpush1.bf16.msra.mxu0 %v708
        %729 = vmatprep.subr.bf16.mxu0 0
        %730 = vmatpush1.bf16.msra.mxu0 %v709
        %731 = vmatprep.subr.bf16.mxu0 0
        %732 = vmatpush1.bf16.msra.mxu0 %v710
        %733 = vmatprep.subr.bf16.mxu0 0
        %734 = vmatpush1.bf16.msra.mxu0 %v711
        %735 = vmatprep.subr.bf16.mxu0 0
        %736 = vmatpush1.bf16.msra.mxu0 %v712
        %737 = vmatprep.subr.bf16.mxu0 0
        %738 = vmatpush1.bf16.msra.mxu0 0
        %739 = vmatprep.subr.bf16.mxu0 0
        %740 = vmatpush1.bf16.msra.mxu0 0
        %741 = vmatprep.subr.bf16.mxu0 0
        %742 = vmatpush1.bf16.msra.mxu0 0
        %743 = vmatprep.subr.bf16.mxu0 0
        %744 = vmatpush1.bf16.msra.mxu0 0
        %745 = vmatprep.subr.bf16.mxu0 0
        %746 = vmatpush1.bf16.msra.mxu0 0
        %747 = vmatprep.subr.bf16.mxu0 0
        %748 = vmatpush1.bf16.msra.mxu0 0
        %749 = vmatprep.subr.bf16.mxu0 0
        %750 = vmatpush1.bf16.msra.mxu0 0
        %751 = vmatprep.subr.bf16.mxu0 0
        %752 = vmatpush1.bf16.msra.mxu0 0
        %753 = vmatprep.mubr.bf16.mxu0 0
        %754 = vmatmul.mubr.bf16.gmra.mrb[0].mxu0 %v653
        %v755 = vpop.f32.mrb[0].mxu0
        %v756 = vadd.f32 0.0, %v755
        %v757 = vpop.f32.mrb[0].mxu0
        %v758 = vpop.f32.mrb[0].mxu0
        %v759 = vadd.f32 0.0, %v758
        %v760 = vpop.f32.mrb[0].mxu0
        %761 = vmatprep.mubr.bf16.mxu0 0
        %762 = vmatmul.mubr.bf16.gmra.mrb[0].mxu0 %v654
        %v763 = vpop.f32.mrb[0].mxu0
        %v764 = vadd.f32 0.0, %v763
        %v765 = vpop.f32.mrb[0].mxu0
        %v766 = vpop.f32.mrb[0].mxu0
        %v767 = vadd.f32 0.0, %v766
        %v768 = vpop.f32.mrb[0].mxu0
        %769 = vmatprep.mubr.bf16.mxu0 0
        %770 = vmatmul.mubr.bf16.gmra.mrb[0].mxu0 %v655
        %v771 = vpop.f32.mrb[0].mxu0
        %v772 = vadd.f32 0.0, %v771
        %v773 = vpop.f32.mrb[0].mxu0
        %v774 = vpop.f32.mrb[0].mxu0
        %v775 = vadd.f32 0.0, %v774
        %v776 = vpop.f32.mrb[0].mxu0
        %777 = vmatprep.mubr.bf16.mxu0 0
        %778 = vmatmul.mubr.bf16.gmra.mrb[0].mxu0 %v656
        %v779 = vpop.f32.mrb[0].mxu0
        %v780 = vadd.f32 0.0, %v779
        %v781 = vpop.f32.mrb[0].mxu0
        %v782 = vpop.f32.mrb[0].mxu0
        %v783 = vadd.f32 0.0, %v782
        %v784 = vpop.f32.mrb[0].mxu0
        %785 = vdwg.mxu0
        %v786 = vadd.f32 %v592, %v756
        %v787 = vadd.f32 %v596, %v759
        %v788 = vadd.f32 %v602, %v764
        %v789 = vadd.f32 %v606, %v767
        %v790 = vadd.f32 %v612, %v772
        %v791 = vadd.f32 %v616, %v775
        %v792 = vadd.f32 %v622, %v780
        %v793 = vadd.f32 %v626, %v783
        %v794 = vld [vmem:[%s6] sm:$0x1]
        %v796 = vlaneseq
        %v797 = vshrl.u32 %v796, 7
        %v798 = vsub.s32 0, %v797
        %v799 = vrot.slane %v794, %v798
        %v801 = vadd.f32 %v786, %v799
        %v802 = vadd.f32 %v787, %v799
        %v803 = vadd.f32 %v788, %v799
        %v804 = vadd.f32 %v789, %v799
        %v805 = vadd.f32 %v790, %v799
        %v806 = vadd.f32 %v791, %v799
        %v807 = vadd.f32 %v792, %v799
        %v808 = vadd.f32 %v793, %v799
        %809 = vst [vmem:[%s272] sm:$0xff] %v801
        %810 = vst [vmem:[%s272 + $0x8] sm:$0xff] %v802
        %811 = vst [vmem:[%s272 + $0x10] sm:$0xff] %v803
        %812 = vst [vmem:[%s272 + $0x18] sm:$0xff] %v804
        %813 = vst [vmem:[%s272 + $0x20] sm:$0xff] %v805
        %814 = vst [vmem:[%s272 + $0x28] sm:$0xff] %v806
        %815 = vst [vmem:[%s272 + $0x30] sm:$0xff] %v807
        %816 = vst [vmem:[%s272 + $0x38] sm:$0xff] %v808
        %s817 = sand.u32 %s181, 1
        %s818 = scalar_lea.sflag [#allocation3], %s817
        %s819 = sand.u32 %s181, 1
        %s820 = smul.addr %s819, 64
        %s821 = scalar_lea.vmem [#allocation2], %s820
        // Predicated region
        $region49: #{encoder_image_full_forward.1} parent=47 // pred_check
          %p822 = pneg %p191
        $region50: #{encoder_image_full_forward.1} parent=47 // pred_check_branch
          %824 = sbr.rel (%p822) target = $region52
        $region51: #{encoder_image_full_forward.1} parent=47 // pred_region
          %s825 = smul.u32 8, %s21
          %s827 = ssub.s32 1024, 1024
          %828 = vsyncadd %s818, %s827
          %s829 = smul.addr %s825, 128
          %s830 = scalar_lea.hbm %s7, %s829
          %s831 = sshll.u32 %s821, 4
          %s832 = int_to_ptr.vmem [resolvable:$true] %s831
          %837 = dma.vmem_to_hbm [thread:$0]  %s832, 1024, %s830, %s818, 128, 128, 8
        $region52: #{encoder_image_full_forward.1} parent=47 // pred_fallthru
          _
      $region48: #{encoder_image_full_forward.1} parent=5 // pred_fallthru
        _
      %p838 = scmp.le.s32.totalorder 2, %s16
      // Predicated region
      $region53: #{encoder_image_full_forward.1} parent=5 // pred_check
        %p839 = pneg %p838
      $region54: #{encoder_image_full_forward.1} parent=5 // pred_check_branch
        %841 = sbr.rel (%p839) target = $region56
      $region55: #{encoder_image_full_forward.1} parent=5 // pred_region
        %s842 = ssub.s32 %s16, 2
        // Predicated region
        $region57: #{encoder_image_full_forward.1} parent=55 // pred_check
          %p843 = pneg %p197
        $region58: #{encoder_image_full_forward.1} parent=55 // pred_check_branch
          %845 = sbr.rel (%p843) target = $region60
        $region59: #{encoder_image_full_forward.1} parent=55 // pred_region
          %s846 = sand.u32 %s182, 1
          %s847 = scalar_lea.sflag [#allocation3], %s846
          %s848 = sand.u32 %s182, 1
          %s849 = smul.addr %s848, 64
          %s850 = scalar_lea.vmem [#allocation2], %s849
          %851 = dma.done %s847, 1024
        $region60: #{encoder_image_full_forward.1} parent=55 // pred_fallthru
          _
      $region56: #{encoder_image_full_forward.1} parent=5 // pred_fallthru
        _
    $region6: #{encoder_image_full_forward.1} parent=1 // loop_footer
      %s20 = sadd.s32 1, %s16
    $region7: #{encoder_image_full_forward.1} parent=1 // loop_footer_branch
      %15 = sbr.rel target = $region3
    $region8: #{encoder_image_full_forward.1} parent=1 // loop_exit
      _
    %852 = vsyncpa [#allocation3], 1
    %s853 = scalar_lea.sflag [#allocation3], 1
    %854 = vsyncpa %s853, 1

</llo_original>
